<compile_context>
chip_gen: v7x
topology: tpu7x:2x2x1
jax: 0.10.0
libtpu: 0.0.40
codegen_flags: <defaults>
</compile_context>

<pallas_src>
import jax
import jax.numpy as jnp
from jax.experimental import pallas as pl
from jax.experimental.pallas import tpu as pltpu

# ---------------- static hyper-parameters (analogue of `args`) --------------
KEY_DIM = 32                        # args.KEY_DIM == hid_dim
N_HEADS = 4
HEAD_DIM = KEY_DIM // N_HEADS       # 8
SEQ = 8
BATCH = 2
SCALE = float(HEAD_DIM) ** 0.5      # torch.sqrt(FloatTensor([head_dim]))
LANES = 128                         # TPU lane width
BS = BATCH * SEQ                    # 16 fused batch*seq rows
ONES_COL = 3 * KEY_DIM              # packed-input column holding constant 1.0
QV_OUT = 2 * N_HEADS * LANES        # 1024: Q heads in [0,512), V heads in [512,1024)
V_OFF = N_HEADS * LANES             # 512
NEG = -1e30                         # finite cross-batch mask (avoids inf-inf)


def _mha_kernel(qkv_ref, qkvT_ref, wqv_ref, wkkt_ref, wo_ref, bo_ref, mask_ref,
                out_ref, attn_ref):
    """Whole MHA forward in one invocation.

    qkv_ref  : (BS, 128)      [q | k | v | 1 | 0...] packed rows
    qkvT_ref : (128, BS)      transpose of qkv (for the K^T path)
    wqv_ref  : (128, 1024)    fused Q/V weights, per-head lane-padded, bias row folded
    wkkt_ref : (512, 128)     produces K^T directly (head h rows at offset h*128)
    wo_ref   : (512, 128)     padded Wo^T consuming the per-head context slab
    bo_ref   : (BS, 128)      fc_o bias, pre-replicated (lanes [0,32) valid)
    mask_ref : (H*BS, BS)     additive cross-batch mask (0 / -1e30), tiled over heads
    out_ref  : (BS, 128)      lanes [0,32) hold fc_o output (rest zero)
    attn_ref : (H*BS, 128)    lanes [0,16) hold attention rows (rest zero)
    """
    # Fused Q/V projection (scale + biases folded): (16,128)@(128,1024)
    qv = jnp.dot(qkv_ref[...], wqv_ref[...], preferred_element_type=jnp.float32)
    # K projection produced already transposed: (512,128)@(128,16)
    kT = jnp.dot(wkkt_ref[...], qkvT_ref[...], preferred_element_type=jnp.float32)

    # Per-head scores over all B*S rows (padding lanes/rows are zero => exact),
    # stacked along sublanes for one batched softmax: (H*BS, BS) = (64, 16).
    e_heads = [
        jnp.dot(qv[:, h * LANES:(h + 1) * LANES],
                kT[h * LANES:(h + 1) * LANES, :],
                preferred_element_type=jnp.float32)
        for h in range(N_HEADS)
    ]
    e_all = jnp.concatenate(e_heads, axis=0) + mask_ref[...]

    m = jnp.max(e_all, axis=-1, keepdims=True)
    p = jnp.exp(e_all - m)                      # masked entries underflow to exactly 0
    denom = jnp.sum(p, axis=-1, keepdims=True)
    a_all = p * pl.reciprocal(denom, approx=False)   # exact softmax rows, (64, 16)

    # TODO(synk): training-mode dropout on `a_all` (stateful PRNG mask) is
    # intentionally omitted; eval mode => identity.

    # Per-head context; each tile is already 128 lanes wide (lanes [0,8) valid).
    ctx = [
        jnp.dot(a_all[h * BS:(h + 1) * BS, :],
                qv[:, V_OFF + h * LANES: V_OFF + (h + 1) * LANES],
                preferred_element_type=jnp.float32)
        for h in range(N_HEADS)
    ]
    x_ctx = jnp.concatenate(ctx, axis=-1)        # (16, 512), tile-aligned concat

    out = jnp.dot(x_ctx, wo_ref[...], preferred_element_type=jnp.float32) + bo_ref[...]
    out_ref[...] = out.astype(out_ref.dtype)     # full, unmasked 128-lane store

    attn_pad = jnp.zeros((N_HEADS * BS, LANES - BS), jnp.float32)
    attn_ref[...] = jnp.concatenate([a_all, attn_pad], axis=-1).astype(attn_ref.dtype)


def prepare_params(params):
    """One-time host-side parameter transform (done at init, NOT per call)."""
    D, H, hd = KEY_DIM, N_HEADS, HEAD_DIM
    wq, wk, wv, wo = params['wq'], params['wk'], params['wv'], params['wo']
    bq, bk, bv, bo = params['bq'], params['bk'], params['bv'], params['bo']

    # Fused Q/V projection weight: input cols [0,32)=q, [64,96)=v, col 96 = ones.
    w_qv = jnp.zeros((LANES, QV_OUT), jnp.float32)
    for h in range(H):
        q_rows = slice(h * hd, (h + 1) * hd)
        w_qv = w_qv.at[0:D, h * LANES: h * LANES + hd].set((wq[q_rows, :] / SCALE).T)
        w_qv = w_qv.at[ONES_COL, h * LANES: h * LANES + hd].set(bq[q_rows] / SCALE)
        w_qv = w_qv.at[2 * D:3 * D, V_OFF + h * LANES: V_OFF + h * LANES + hd].set(wv[q_rows, :].T)
        w_qv = w_qv.at[ONES_COL, V_OFF + h * LANES: V_OFF + h * LANES + hd].set(bv[q_rows])

    # K^T-producing weight: contracted against the transposed packed input.
    wk_kt = jnp.zeros((H * LANES, LANES), jnp.float32)
    for h in range(H):
        rows = slice(h * LANES, h * LANES + hd)
        wk_kt = wk_kt.at[rows, D:2 * D].set(wk[h * hd:(h + 1) * hd, :])
        wk_kt = wk_kt.at[rows, ONES_COL].set(bk[h * hd:(h + 1) * hd])

    # Output projection consuming the padded per-head context slab.
    wo_pad = jnp.zeros((H * LANES, LANES), jnp.float32)
    for h in range(H):
        wo_pad = wo_pad.at[h * LANES: h * LANES + hd, 0:D].set(wo[:, h * hd:(h + 1) * hd].T)

    bo_rep = jnp.zeros((BS, LANES), jnp.float32).at[:, 0:D].set(
        jnp.broadcast_to(bo, (BS, D)))

    # Cross-batch additive mask, tiled over heads: (H*BS, BS).
    bid = jnp.repeat(jnp.arange(BATCH), SEQ)
    mask16 = jnp.where(bid[:, None] == bid[None, :], 0.0, NEG).astype(jnp.float32)
    mask = jnp.tile(mask16, (N_HEADS, 1))

    return w_qv, wk_kt, wo_pad, bo_rep, mask


@jax.jit
def multi_head_attention(query, key, value, w_qv, wk_kt, wo_pad, bo_rep, mask):
    """query/key/value: (B, S, KEY_DIM) float32. Returns (x, attention, KLD)."""
    B, S, D = query.shape

    # Pack inputs once (cheap XLA-side plumbing): [q | k | v | 1 | 0...] -> (BS, 128)
    qkv = jnp.concatenate(
        [query.reshape(B * S, D), key.reshape(B * S, D), value.reshape(B * S, D),
         jnp.ones((B * S, 1), jnp.float32),
         jnp.zeros((B * S, LANES - 3 * D - 1), jnp.float32)], axis=-1)
    qkv_T = qkv.T                               # (128, BS), for the K^T path

    full = lambda shape: pl.BlockSpec(shape, lambda i: (0,) * len(shape))

    out_full, attn_full = pl.pallas_call(
        _mha_kernel,
        out_shape=(
            jax.ShapeDtypeStruct((B * S, LANES), jnp.float32),
            jax.ShapeDtypeStruct((N_HEADS * B * S, LANES), jnp.float32),
        ),
        grid_spec=pltpu.PrefetchScalarGridSpec(
            num_scalar_prefetch=0,
            grid=(1,),                           # whole problem fits VMEM (~1 MiB)
            in_specs=[
                full((B * S, LANES)),            # packed q|k|v|1
                full((LANES, B * S)),            # its transpose
                full((LANES, QV_OUT)),           # fused Q/V weights
                full((N_HEADS * LANES, LANES)),  # K^T weights
                full((N_HEADS * LANES, LANES)),  # padded Wo^T
                full((B * S, LANES)),            # replicated bo
                full((N_HEADS * B * S, B * S)),  # cross-batch mask
            ],
            out_specs=[
                full((B * S, LANES)),            # fc_o output slab (lane-dense)
                full((N_HEADS * B * S, LANES)),  # attention slab   (lane-dense)
            ],
        ),
        compiler_params=pltpu.CompilerParams(
            dimension_semantics=("arbitrary",)),
    )(qkv, qkv_T, w_qv, wk_kt, wo_pad, bo_rep, mask)

    # Cheap wrapper-side layout plumbing back to the PyTorch output shapes.
    out = out_full[:, :D].reshape(B, S, D)
    a = attn_full[:, :B * S].reshape(N_HEADS, B, S, B, S)
    idx = jnp.arange(B)
    attn = a[:, idx, :, idx, :]                  # (B, H, S, S): drop masked cross-batch
    # TODO(synk): only the 'dot' attention branch is implemented; the
    # 'ikandirect'/'mikan' branches (ika_ns, copula net, KL term) are out of scope.
    kld = jnp.array(0.0, jnp.float32)            # 'dot' path: KLD = 0
    return out, attn, kld


def init_params(key):
    """Deterministic init mimicking nn.Linear default U[-1/sqrt(in), 1/sqrt(in)]."""
    bound = 1.0 / (KEY_DIM ** 0.5)
    names = ['wq', 'bq', 'wk', 'bk', 'wv', 'bv', 'wo', 'bo']
    keys = jax.random.split(key, len(names))
    params = {}
    for n, k in zip(names, keys):
        shape = (KEY_DIM, KEY_DIM) if n.startswith('w') else (KEY_DIM,)
        params[n] = jax.random.uniform(k, shape, jnp.float32, -bound, bound)
    return params


def reference_mha(query, key, value, params):
    """Pure-JAX reference for correctness check (matches the PyTorch module)."""
    B, S, D = query.shape
    hp = jax.lax.Precision.HIGHEST
    lin = lambda x, w, b: jnp.dot(x, w.T, precision=hp) + b
    Q = lin(query, params['wq'], params['bq'])
    K = lin(key, params['wk'], params['bk'])
    V = lin(value, params['wv'], params['bv'])
    r = lambda x: x.reshape(B, S, N_HEADS, HEAD_DIM).transpose(0, 2, 1, 3)
    Qh, Kh, Vh = r(Q), r(K), r(V)
    energy = jnp.einsum('bhqd,bhkd->bhqk', Qh, Kh, precision=hp) / SCALE
    attn = jax.nn.softmax(energy, axis=-1)
    x = jnp.einsum('bhqk,bhkd->bhqd', attn, Vh, precision=hp)
    x = x.transpose(0, 2, 1, 3).reshape(B, S, D)
    out = lin(x, params['wo'], params['bo'])
    return out, attn


if __name__ == "__main__":
    root = jax.random.PRNGKey(0)
    kq, kk, kv, kp = jax.random.split(root, 4)
    query = jax.random.normal(kq, (BATCH, SEQ, KEY_DIM), jnp.float32)
    key_in = jax.random.normal(kk, (BATCH, SEQ, KEY_DIM), jnp.float32)
    value = jax.random.normal(kv, (BATCH, SEQ, KEY_DIM), jnp.float32)
    params = init_params(kp)
    prepped = prepare_params(params)             # one-time host-side prep

    out, attn, kld = multi_head_attention(query, key_in, value, *prepped)
    jax.block_until_ready((out, attn, kld))

    ref_out, ref_attn = reference_mha(query, key_in, value, params)
    assert attn.shape == ref_attn.shape and out.shape == ref_out.shape
    assert jnp.allclose(attn, ref_attn, atol=2e-3, rtol=2e-3), "attention mismatch"
    assert jnp.allclose(out, ref_out, atol=5e-3, rtol=5e-3), "output mismatch"
    assert jnp.allclose(jnp.sum(attn, axis=-1), 1.0, atol=2e-3), "softmax rows off"
    assert float(kld) == 0.0

    print("KERNEL_OK")
</pallas_src>

<mosaic_0001>
module attributes {stable_mosaic.version = 11 : i64} {
  func.func @_mha_kernel(%arg0: i32, %arg1: memref<16x128xf32, #tpu.memory_space<vmem>>, %arg2: memref<128x16xf32, #tpu.memory_space<vmem>>, %arg3: memref<128x1024xf32, #tpu.memory_space<vmem>>, %arg4: memref<512x128xf32, #tpu.memory_space<vmem>>, %arg5: memref<512x128xf32, #tpu.memory_space<vmem>>, %arg6: memref<16x128xf32, #tpu.memory_space<vmem>>, %arg7: memref<64x16xf32, #tpu.memory_space<vmem>>, %arg8: memref<16x128xf32, #tpu.memory_space<vmem>>, %arg9: memref<64x128xf32, #tpu.memory_space<vmem>>) attributes {dimension_semantics = [#tpu.dimension_semantics<arbitrary>], iteration_bounds = array<i64: 1>, scalar_prefetch = 0 : i64, scratch_operands = 0 : i64, tpu.core_type = #tpu.core_type<tc>, window_params = [{pipeline_mode = #tpu.pipeline_mode<synchronous>, transform_indices = @transform_0, window_bounds = array<i64: 16, 128>}, {pipeline_mode = #tpu.pipeline_mode<synchronous>, transform_indices = @transform_1, window_bounds = array<i64: 128, 16>}, {pipeline_mode = #tpu.pipeline_mode<synchronous>, transform_indices = @transform_2, window_bounds = array<i64: 128, 1024>}, {pipeline_mode = #tpu.pipeline_mode<synchronous>, transform_indices = @transform_3, window_bounds = array<i64: 512, 128>}, {pipeline_mode = #tpu.pipeline_mode<synchronous>, transform_indices = @transform_4, window_bounds = array<i64: 512, 128>}, {pipeline_mode = #tpu.pipeline_mode<synchronous>, transform_indices = @transform_5, window_bounds = array<i64: 16, 128>}, {pipeline_mode = #tpu.pipeline_mode<synchronous>, transform_indices = @transform_6, window_bounds = array<i64: 64, 16>}, {pipeline_mode = #tpu.pipeline_mode<synchronous>, transform_indices = @transform_7, window_bounds = array<i64: 16, 128>}, {pipeline_mode = #tpu.pipeline_mode<synchronous>, transform_indices = @transform_8, window_bounds = array<i64: 64, 128>}]} {
    %c0 = arith.constant 0 : index
    %c0_0 = arith.constant 0 : index
    %0 = vector.load %arg1[%c0, %c0_0] : memref<16x128xf32, #tpu.memory_space<vmem>>, vector<16x128xf32>
    %c0_1 = arith.constant 0 : index
    %c0_2 = arith.constant 0 : index
    %1 = vector.load %arg3[%c0_1, %c0_2] : memref<128x1024xf32, #tpu.memory_space<vmem>>, vector<128x1024xf32>
    %cst = arith.constant dense<0.000000e+00> : vector<16x1024xf32>
    %2 = tpu.matmul %0, %1, %cst {dimension_numbers = #tpu.dot_dimension_numbers<[1], [0], [0], [1], [0, 0, 1, 1], [], []>} : vector<16x128xf32>, vector<128x1024xf32>, vector<16x1024xf32> -> vector<16x1024xf32>
    %c0_3 = arith.constant 0 : index
    %c0_4 = arith.constant 0 : index
    %3 = vector.load %arg4[%c0_3, %c0_4] : memref<512x128xf32, #tpu.memory_space<vmem>>, vector<512x128xf32>
    %c0_5 = arith.constant 0 : index
    %c0_6 = arith.constant 0 : index
    %4 = vector.load %arg2[%c0_5, %c0_6] : memref<128x16xf32, #tpu.memory_space<vmem>>, vector<128x16xf32>
    %cst_7 = arith.constant dense<0.000000e+00> : vector<512x16xf32>
    %5 = tpu.matmul %3, %4, %cst_7 {dimension_numbers = #tpu.dot_dimension_numbers<[1], [0], [0], [1], [0, 0, 1, 1], [], []>} : vector<512x128xf32>, vector<128x16xf32>, vector<512x16xf32> -> vector<512x16xf32>
    %6 = vector.extract_strided_slice %2 {offsets = [0, 0], sizes = [16, 128], strides = [1, 1]} : vector<16x1024xf32> to vector<16x128xf32>
    %7 = vector.extract_strided_slice %5 {offsets = [0, 0], sizes = [128, 16], strides = [1, 1]} : vector<512x16xf32> to vector<128x16xf32>
    %cst_8 = arith.constant dense<0.000000e+00> : vector<16x16xf32>
    %8 = tpu.matmul %6, %7, %cst_8 {dimension_numbers = #tpu.dot_dimension_numbers<[1], [0], [0], [1], [0, 0, 1, 1], [], []>} : vector<16x128xf32>, vector<128x16xf32>, vector<16x16xf32> -> vector<16x16xf32>
    %9 = vector.extract_strided_slice %2 {offsets = [0, 128], sizes = [16, 128], strides = [1, 1]} : vector<16x1024xf32> to vector<16x128xf32>
    %10 = vector.extract_strided_slice %5 {offsets = [128, 0], sizes = [128, 16], strides = [1, 1]} : vector<512x16xf32> to vector<128x16xf32>
    %cst_9 = arith.constant dense<0.000000e+00> : vector<16x16xf32>
    %11 = tpu.matmul %9, %10, %cst_9 {dimension_numbers = #tpu.dot_dimension_numbers<[1], [0], [0], [1], [0, 0, 1, 1], [], []>} : vector<16x128xf32>, vector<128x16xf32>, vector<16x16xf32> -> vector<16x16xf32>
    %12 = vector.extract_strided_slice %2 {offsets = [0, 256], sizes = [16, 128], strides = [1, 1]} : vector<16x1024xf32> to vector<16x128xf32>
    %13 = vector.extract_strided_slice %5 {offsets = [256, 0], sizes = [128, 16], strides = [1, 1]} : vector<512x16xf32> to vector<128x16xf32>
    %cst_10 = arith.constant dense<0.000000e+00> : vector<16x16xf32>
    %14 = tpu.matmul %12, %13, %cst_10 {dimension_numbers = #tpu.dot_dimension_numbers<[1], [0], [0], [1], [0, 0, 1, 1], [], []>} : vector<16x128xf32>, vector<128x16xf32>, vector<16x16xf32> -> vector<16x16xf32>
    %15 = vector.extract_strided_slice %2 {offsets = [0, 384], sizes = [16, 128], strides = [1, 1]} : vector<16x1024xf32> to vector<16x128xf32>
    %16 = vector.extract_strided_slice %5 {offsets = [384, 0], sizes = [128, 16], strides = [1, 1]} : vector<512x16xf32> to vector<128x16xf32>
    %cst_11 = arith.constant dense<0.000000e+00> : vector<16x16xf32>
    %17 = tpu.matmul %15, %16, %cst_11 {dimension_numbers = #tpu.dot_dimension_numbers<[1], [0], [0], [1], [0, 0, 1, 1], [], []>} : vector<16x128xf32>, vector<128x16xf32>, vector<16x16xf32> -> vector<16x16xf32>
    %18 = tpu.concatenate %8, %11, %14, %17 in 0 : vector<16x16xf32>, vector<16x16xf32>, vector<16x16xf32>, vector<16x16xf32> -> vector<64x16xf32>
    %c0_12 = arith.constant 0 : index
    %c0_13 = arith.constant 0 : index
    %19 = vector.load %arg7[%c0_12, %c0_13] : memref<64x16xf32, #tpu.memory_space<vmem>>, vector<64x16xf32>
    %20 = arith.addf %18, %19 : vector<64x16xf32>
    %cst_14 = arith.constant dense<0xFF800000> : vector<64xf32>
    %21 = vector.multi_reduction <maximumf>, %20, %cst_14 [1] : vector<64x16xf32> to vector<64xf32>
    %22 = vector.shape_cast %21 : vector<64xf32> to vector<64x1xf32>
    %23 = vector.broadcast %22 : vector<64x1xf32> to vector<64x16xf32>
    %24 = arith.subf %20, %23 : vector<64x16xf32>
    %25 = math.exp %24 : vector<64x16xf32>
    %cst_15 = arith.constant dense<0.000000e+00> : vector<64xf32>
    %26 = vector.multi_reduction <add>, %25, %cst_15 [1] : vector<64x16xf32> to vector<64xf32>
    %27 = vector.shape_cast %26 : vector<64xf32> to vector<64x1xf32>
    %28 = tpu.reciprocal %27 : vector<64x1xf32> -> vector<64x1xf32>
    %29 = vector.broadcast %28 : vector<64x1xf32> to vector<64x16xf32>
    %30 = arith.mulf %25, %29 : vector<64x16xf32>
    %31 = vector.extract_strided_slice %30 {offsets = [0, 0], sizes = [16, 16], strides = [1, 1]} : vector<64x16xf32> to vector<16x16xf32>
    %32 = vector.extract_strided_slice %2 {offsets = [0, 512], sizes = [16, 128], strides = [1, 1]} : vector<16x1024xf32> to vector<16x128xf32>
    %cst_16 = arith.constant dense<0.000000e+00> : vector<16x128xf32>
    %33 = tpu.matmul %31, %32, %cst_16 {dimension_numbers = #tpu.dot_dimension_numbers<[1], [0], [0], [1], [0, 0, 1, 1], [], []>} : vector<16x16xf32>, vector<16x128xf32>, vector<16x128xf32> -> vector<16x128xf32>
    %34 = vector.extract_strided_slice %30 {offsets = [16, 0], sizes = [16, 16], strides = [1, 1]} : vector<64x16xf32> to vector<16x16xf32>
    %35 = vector.extract_strided_slice %2 {offsets = [0, 640], sizes = [16, 128], strides = [1, 1]} : vector<16x1024xf32> to vector<16x128xf32>
    %cst_17 = arith.constant dense<0.000000e+00> : vector<16x128xf32>
    %36 = tpu.matmul %34, %35, %cst_17 {dimension_numbers = #tpu.dot_dimension_numbers<[1], [0], [0], [1], [0, 0, 1, 1], [], []>} : vector<16x16xf32>, vector<16x128xf32>, vector<16x128xf32> -> vector<16x128xf32>
    %37 = vector.extract_strided_slice %30 {offsets = [32, 0], sizes = [16, 16], strides = [1, 1]} : vector<64x16xf32> to vector<16x16xf32>
    %38 = vector.extract_strided_slice %2 {offsets = [0, 768], sizes = [16, 128], strides = [1, 1]} : vector<16x1024xf32> to vector<16x128xf32>
    %cst_18 = arith.constant dense<0.000000e+00> : vector<16x128xf32>
    %39 = tpu.matmul %37, %38, %cst_18 {dimension_numbers = #tpu.dot_dimension_numbers<[1], [0], [0], [1], [0, 0, 1, 1], [], []>} : vector<16x16xf32>, vector<16x128xf32>, vector<16x128xf32> -> vector<16x128xf32>
    %40 = vector.extract_strided_slice %30 {offsets = [48, 0], sizes = [16, 16], strides = [1, 1]} : vector<64x16xf32> to vector<16x16xf32>
    %41 = vector.extract_strided_slice %2 {offsets = [0, 896], sizes = [16, 128], strides = [1, 1]} : vector<16x1024xf32> to vector<16x128xf32>
    %cst_19 = arith.constant dense<0.000000e+00> : vector<16x128xf32>
    %42 = tpu.matmul %40, %41, %cst_19 {dimension_numbers = #tpu.dot_dimension_numbers<[1], [0], [0], [1], [0, 0, 1, 1], [], []>} : vector<16x16xf32>, vector<16x128xf32>, vector<16x128xf32> -> vector<16x128xf32>
    %43 = tpu.concatenate %33, %36, %39, %42 in 1 : vector<16x128xf32>, vector<16x128xf32>, vector<16x128xf32>, vector<16x128xf32> -> vector<16x512xf32>
    %c0_20 = arith.constant 0 : index
    %c0_21 = arith.constant 0 : index
    %44 = vector.load %arg5[%c0_20, %c0_21] : memref<512x128xf32, #tpu.memory_space<vmem>>, vector<512x128xf32>
    %cst_22 = arith.constant dense<0.000000e+00> : vector<16x128xf32>
    %45 = tpu.matmul %43, %44, %cst_22 {dimension_numbers = #tpu.dot_dimension_numbers<[1], [0], [0], [1], [0, 0, 1, 1], [], []>} : vector<16x512xf32>, vector<512x128xf32>, vector<16x128xf32> -> vector<16x128xf32>
    %c0_23 = arith.constant 0 : index
    %c0_24 = arith.constant 0 : index
    %46 = vector.load %arg6[%c0_23, %c0_24] : memref<16x128xf32, #tpu.memory_space<vmem>>, vector<16x128xf32>
    %47 = arith.addf %45, %46 : vector<16x128xf32>
    %c0_25 = arith.constant 0 : index
    %c0_26 = arith.constant 0 : index
    %48 = vector.load %arg8[%c0_25, %c0_26] : memref<16x128xf32, #tpu.memory_space<vmem>>, vector<16x128xf32>
    tpu.vector_store %arg8[%c0_25, %c0_26], %47 {strides = array<i32>} : memref<16x128xf32, #tpu.memory_space<vmem>>, vector<16x128xf32>,
    %cst_27 = arith.constant 0.000000e+00 : f32
    %49 = vector.broadcast %cst_27 : f32 to vector<64x112xf32>
    %50 = tpu.concatenate %30, %49 in 1 : vector<64x16xf32>, vector<64x112xf32> -> vector<64x128xf32>
    %c0_28 = arith.constant 0 : index
    %c0_29 = arith.constant 0 : index
    %51 = vector.load %arg9[%c0_28, %c0_29] : memref<64x128xf32, #tpu.memory_space<vmem>>, vector<64x128xf32>
    tpu.vector_store %arg9[%c0_28, %c0_29], %50 {strides = array<i32>} : memref<64x128xf32, #tpu.memory_space<vmem>>, vector<64x128xf32>,
    return
  }
  func.func @transform_0(%arg0: i32) -> (i32, i32) {
    %c0_i32 = arith.constant 0 : i32
    %c0_i32_0 = arith.constant 0 : i32
    %c0_i32_1 = arith.constant 0 : i32
    return %c0_i32, %c0_i32_0 : i32, i32
  }
  func.func @transform_1(%arg0: i32) -> (i32, i32) {
    %c0_i32 = arith.constant 0 : i32
    %c0_i32_0 = arith.constant 0 : i32
    %c0_i32_1 = arith.constant 0 : i32
    return %c0_i32, %c0_i32_0 : i32, i32
  }
  func.func @transform_2(%arg0: i32) -> (i32, i32) {
    %c0_i32 = arith.constant 0 : i32
    %c0_i32_0 = arith.constant 0 : i32
    %c0_i32_1 = arith.constant 0 : i32
    return %c0_i32, %c0_i32_0 : i32, i32
  }
  func.func @transform_3(%arg0: i32) -> (i32, i32) {
    %c0_i32 = arith.constant 0 : i32
    %c0_i32_0 = arith.constant 0 : i32
    %c0_i32_1 = arith.constant 0 : i32
    return %c0_i32, %c0_i32_0 : i32, i32
  }
  func.func @transform_4(%arg0: i32) -> (i32, i32) {
    %c0_i32 = arith.constant 0 : i32
    %c0_i32_0 = arith.constant 0 : i32
    %c0_i32_1 = arith.constant 0 : i32
    return %c0_i32, %c0_i32_0 : i32, i32
  }
  func.func @transform_5(%arg0: i32) -> (i32, i32) {
    %c0_i32 = arith.constant 0 : i32
    %c0_i32_0 = arith.constant 0 : i32
    %c0_i32_1 = arith.constant 0 : i32
    return %c0_i32, %c0_i32_0 : i32, i32
  }
  func.func @transform_6(%arg0: i32) -> (i32, i32) {
    %c0_i32 = arith.constant 0 : i32
    %c0_i32_0 = arith.constant 0 : i32
    %c0_i32_1 = arith.constant 0 : i32
    return %c0_i32, %c0_i32_0 : i32, i32
  }
  func.func @transform_7(%arg0: i32) -> (i32, i32) {
    %c0_i32 = arith.constant 0 : i32
    %c0_i32_0 = arith.constant 0 : i32
    %c0_i32_1 = arith.constant 0 : i32
    return %c0_i32, %c0_i32_0 : i32, i32
  }
  func.func @transform_8(%arg0: i32) -> (i32, i32) {
    %c0_i32 = arith.constant 0 : i32
    %c0_i32_0 = arith.constant 0 : i32
    %c0_i32_1 = arith.constant 0 : i32
    return %c0_i32, %c0_i32_0 : i32, i32
  }
}

</mosaic_0001>

<llo_original>
// kernel: multi_head_attention.1
$region0: #{multi_head_attention.1}
  #allocation0 [shape = 'u32[]', space=smem, size = 0x4, offset = 0x4, fixed_abs, tag = 'smem constant byte address 0x4 - core index']
  #allocation1 [shape = 'u32[144,128]{1,0:T(1,128)}', space=vmem, size = 0x12000, scoped, tag = 'internal scratch']
  %s0 = inlined_call_operand.vmem [shape: f32[16,128], index: 0, kind: input, shape index: {}]
  %s1 = inlined_call_operand.vmem [shape: f32[128,16], index: 1, kind: input, shape index: {}]
  %s2 = inlined_call_operand.hbm [shape: f32[128,1024], index: 2, kind: input, shape index: {}]
  %s3 = inlined_call_operand.hbm [shape: f32[512,128], index: 3, kind: input, shape index: {}]
  %s4 = inlined_call_operand.hbm [shape: f32[512,128], index: 4, kind: input, shape index: {}]
  %s5 = inlined_call_operand.vmem [shape: f32[16,128], index: 5, kind: input, shape index: {}]
  %s6 = inlined_call_operand.vmem [shape: f32[64,16], index: 6, kind: input, shape index: {}]
  %s7 = inlined_call_operand.vmem [shape: f32[16,128], index: 7, kind: output, shape index: {0}]
  %s8 = inlined_call_operand.vmem [shape: f32[64,128], index: 8, kind: output, shape index: {1}]
  %9 = xla_tuple %s7, %s8
  %s10 = sld [smem:[#allocation0]]
  $region58: #{multi_head_attention.1} parent=0
    _
  %s12 = ssub.s32 1, %s10
  %s13 = scalar_select 0, %s12, %s10
  $region1: #{multi_head_attention.1} parent=0
    #allocation2 [shape = 'u8[524288]{0}', space=vmem, size = 0x80000, scoped, tag = 'input window, operand 2, single buffered']
    #allocation3 [shape = 's32[1]{0}', space=sflag, size = 0x4, scoped, tag = 'scoped memory for multi_head_attention.1']
    #allocation4 [shape = 'u8[262144]{0}', space=vmem, size = 0x40000, scoped, tag = 'input window, operand 3, single buffered']
    #allocation5 [shape = 's32[1]{0}', space=sflag, size = 0x4, scoped, tag = 'scoped memory for multi_head_attention.1']
    #allocation6 [shape = 'u8[262144]{0}', space=vmem, size = 0x40000, scoped, tag = 'input window, operand 4, single buffered']
    %14 = vsyncpa [#allocation3], 0
    %15 = vsyncpa [#allocation5], 0
    // Predicated region
    $region2: #{multi_head_attention.1} parent=1 // pred_check
      _
    $region3: #{multi_head_attention.1} parent=1 // pred_check_branch
      %17 = sbr.rel (0) target = $region5
    $region4: #{multi_head_attention.1} parent=1 // pred_region
      _
    $region5: #{multi_head_attention.1} parent=1 // pred_fallthru
      _
    // Predicated region
    $region6: #{multi_head_attention.1} parent=1 // pred_check
      _
    $region7: #{multi_head_attention.1} parent=1 // pred_check_branch
      %19 = sbr.rel (0) target = $region9
    $region8: #{multi_head_attention.1} parent=1 // pred_region
      _
    $region9: #{multi_head_attention.1} parent=1 // pred_fallthru
      _
    // Predicated region
    $region10: #{multi_head_attention.1} parent=1 // pred_check
      _
    $region11: #{multi_head_attention.1} parent=1 // pred_check_branch
      %21 = sbr.rel (0) target = $region13
    $region12: #{multi_head_attention.1} parent=1 // pred_region
      %s23 = ssub.s32 16384, 16384
      %24 = vsyncadd [#allocation3], %s23
      %s25 = sshll.u32 [#allocation2], 4
      %s26 = int_to_ptr.vmem [resolvable:$true] %s25
      %31 = dma.hbm_to_vmem [thread:$0]  %s2, 16384, %s26, [#allocation3], 1024, 1024, 64
    $region13: #{multi_head_attention.1} parent=1 // pred_fallthru
      _
    // Predicated region
    $region14: #{multi_head_attention.1} parent=1 // pred_check
      _
    $region15: #{multi_head_attention.1} parent=1 // pred_check_branch
      %33 = sbr.rel (0) target = $region17
    $region16: #{multi_head_attention.1} parent=1 // pred_region
      %s35 = ssub.s32 8192, 8192
      %36 = vsyncadd [#allocation5], %s35
      %s37 = sshll.u32 [#allocation4], 4
      %s38 = int_to_ptr.vmem [resolvable:$true] %s37
      %43 = dma.hbm_to_vmem [thread:$0]  %s3, 8192, %s38, [#allocation5], 128, 128, 8
    $region17: #{multi_head_attention.1} parent=1 // pred_fallthru
      _
    // Predicated region
    $region18: #{multi_head_attention.1} parent=1 // pred_check
      _
    $region19: #{multi_head_attention.1} parent=1 // pred_check_branch
      %45 = sbr.rel (0) target = $region21
    $region20: #{multi_head_attention.1} parent=1 // pred_region
      %s47 = ssub.s32 8192, 8192
      %48 = vsyncadd [#allocation5], %s47
      %s49 = sshll.u32 [#allocation6], 4
      %s50 = int_to_ptr.vmem [resolvable:$true] %s49
      %55 = dma.hbm_to_vmem [thread:$0]  %s4, 8192, %s50, [#allocation5], 128, 128, 8
    $region21: #{multi_head_attention.1} parent=1 // pred_fallthru
      _
    // Predicated region
    $region22: #{multi_head_attention.1} parent=1 // pred_check
      _
    $region23: #{multi_head_attention.1} parent=1 // pred_check_branch
      %57 = sbr.rel (0) target = $region25
    $region24: #{multi_head_attention.1} parent=1 // pred_region
      _
    $region25: #{multi_head_attention.1} parent=1 // pred_fallthru
      _
    // Predicated region
    $region26: #{multi_head_attention.1} parent=1 // pred_check
      _
    $region27: #{multi_head_attention.1} parent=1 // pred_check_branch
      %59 = sbr.rel (0) target = $region29
    $region28: #{multi_head_attention.1} parent=1 // pred_region
      _
    $region29: #{multi_head_attention.1} parent=1 // pred_fallthru
      _
    // Predicated region
    $region30: #{multi_head_attention.1} parent=1 // pred_check
      _
    $region31: #{multi_head_attention.1} parent=1 // pred_check_branch
      %61 = sbr.rel (0) target = $region33
    $region32: #{multi_head_attention.1} parent=1 // pred_region
      %62 = dma.done [#allocation3], 16384
    $region33: #{multi_head_attention.1} parent=1 // pred_fallthru
      _
    // Predicated region
    $region34: #{multi_head_attention.1} parent=1 // pred_check
      _
    $region35: #{multi_head_attention.1} parent=1 // pred_check_branch
      %64 = sbr.rel (0) target = $region37
    $region36: #{multi_head_attention.1} parent=1 // pred_region
      %65 = dma.done [#allocation5], 8192
    $region37: #{multi_head_attention.1} parent=1 // pred_fallthru
      _
    // Predicated region
    $region38: #{multi_head_attention.1} parent=1 // pred_check
      _
    $region39: #{multi_head_attention.1} parent=1 // pred_check_branch
      %67 = sbr.rel (0) target = $region41
    $region40: #{multi_head_attention.1} parent=1 // pred_region
      %68 = dma.done [#allocation5], 8192
    $region41: #{multi_head_attention.1} parent=1 // pred_fallthru
      _
    %v69 = vld [vmem:[%s0] sm:$0xff]
    %v70 = vld [vmem:[%s0 + $0x8] sm:$0xff]
    %v71 = vld [vmem:[#allocation2] sm:$0xff]
    %v72 = vld [vmem:[#allocation2 + $0x8] sm:$0xff]
    %v73 = vld [vmem:[#allocation2 + $0x10] sm:$0xff]
    %v74 = vld [vmem:[#allocation2 + $0x18] sm:$0xff]
    %v75 = vld [vmem:[#allocation2 + $0x20] sm:$0xff]
    %v76 = vld [vmem:[#allocation2 + $0x28] sm:$0xff]
    %v77 = vld [vmem:[#allocation2 + $0x30] sm:$0xff]
    %v78 = vld [vmem:[#allocation2 + $0x38] sm:$0xff]
    %v79 = vld [vmem:[#allocation2 + $0x40] sm:$0xff]
    %v80 = vld [vmem:[#allocation2 + $0x48] sm:$0xff]
    %v81 = vld [vmem:[#allocation2 + $0x50] sm:$0xff]
    %v82 = vld [vmem:[#allocation2 + $0x58] sm:$0xff]
    %v83 = vld [vmem:[#allocation2 + $0x60] sm:$0xff]
    %v84 = vld [vmem:[#allocation2 + $0x68] sm:$0xff]
    %v85 = vld [vmem:[#allocation2 + $0x70] sm:$0xff]
    %v86 = vld [vmem:[#allocation2 + $0x78] sm:$0xff]
    %v87 = vld [vmem:[#allocation2 + $0x80] sm:$0xff]
    %v88 = vld [vmem:[#allocation2 + $0x88] sm:$0xff]
    %v89 = vld [vmem:[#allocation2 + $0x90] sm:$0xff]
    %v90 = vld [vmem:[#allocation2 + $0x98] sm:$0xff]
    %v91 = vld [vmem:[#allocation2 + $0xa0] sm:$0xff]
    %v92 = vld [vmem:[#allocation2 + $0xa8] sm:$0xff]
    %v93 = vld [vmem:[#allocation2 + $0xb0] sm:$0xff]
    %v94 = vld [vmem:[#allocation2 + $0xb8] sm:$0xff]
    %v95 = vld [vmem:[#allocation2 + $0xc0] sm:$0xff]
    %v96 = vld [vmem:[#allocation2 + $0xc8] sm:$0xff]
    %v97 = vld [vmem:[#allocation2 + $0xd0] sm:$0xff]
    %v98 = vld [vmem:[#allocation2 + $0xd8] sm:$0xff]
    %v99 = vld [vmem:[#allocation2 + $0xe0] sm:$0xff]
    %v100 = vld [vmem:[#allocation2 + $0xe8] sm:$0xff]
    %v101 = vld [vmem:[#allocation2 + $0xf0] sm:$0xff]
    %v102 = vld [vmem:[#allocation2 + $0xf8] sm:$0xff]
    %v103 = vld [vmem:[#allocation2 + $0x100] sm:$0xff]
    %v104 = vld [vmem:[#allocation2 + $0x108] sm:$0xff]
    %v105 = vld [vmem:[#allocation2 + $0x110] sm:$0xff]
    %v106 = vld [vmem:[#allocation2 + $0x118] sm:$0xff]
    %v107 = vld [vmem:[#allocation2 + $0x120] sm:$0xff]
    %v108 = vld [vmem:[#allocation2 + $0x128] sm:$0xff]
    %v109 = vld [vmem:[#allocation2 + $0x130] sm:$0xff]
    %v110 = vld [vmem:[#allocation2 + $0x138] sm:$0xff]
    %v111 = vld [vmem:[#allocation2 + $0x140] sm:$0xff]
    %v112 = vld [vmem:[#allocation2 + $0x148] sm:$0xff]
    %v113 = vld [vmem:[#allocation2 + $0x150] sm:$0xff]
    %v114 = vld [vmem:[#allocation2 + $0x158] sm:$0xff]
    %v115 = vld [vmem:[#allocation2 + $0x160] sm:$0xff]
    %v116 = vld [vmem:[#allocation2 + $0x168] sm:$0xff]
    %v117 = vld [vmem:[#allocation2 + $0x170] sm:$0xff]
    %v118 = vld [vmem:[#allocation2 + $0x178] sm:$0xff]
    %v119 = vld [vmem:[#allocation2 + $0x180] sm:$0xff]
    %v120 = vld [vmem:[#allocation2 + $0x188] sm:$0xff]
    %v121 = vld [vmem:[#allocation2 + $0x190] sm:$0xff]
    %v122 = vld [vmem:[#allocation2 + $0x198] sm:$0xff]
    %v123 = vld [vmem:[#allocation2 + $0x1a0] sm:$0xff]
    %v124 = vld [vmem:[#allocation2 + $0x1a8] sm:$0xff]
    %v125 = vld [vmem:[#allocation2 + $0x1b0] sm:$0xff]
    %v126 = vld [vmem:[#allocation2 + $0x1b8] sm:$0xff]
    %v127 = vld [vmem:[#allocation2 + $0x1c0] sm:$0xff]
    %v128 = vld [vmem:[#allocation2 + $0x1c8] sm:$0xff]
    %v129 = vld [vmem:[#allocation2 + $0x1d0] sm:$0xff]
    %v130 = vld [vmem:[#allocation2 + $0x1d8] sm:$0xff]
    %v131 = vld [vmem:[#allocation2 + $0x1e0] sm:$0xff]
    %v132 = vld [vmem:[#allocation2 + $0x1e8] sm:$0xff]
    %v133 = vld [vmem:[#allocation2 + $0x1f0] sm:$0xff]
    %v134 = vld [vmem:[#allocation2 + $0x1f8] sm:$0xff]
    %v135 = vld [vmem:[#allocation2 + $0x200] sm:$0xff]
    %v136 = vld [vmem:[#allocation2 + $0x208] sm:$0xff]
    %v137 = vld [vmem:[#allocation2 + $0x210] sm:$0xff]
    %v138 = vld [vmem:[#allocation2 + $0x218] sm:$0xff]
    %v139 = vld [vmem:[#allocation2 + $0x220] sm:$0xff]
    %v140 = vld [vmem:[#allocation2 + $0x228] sm:$0xff]
    %v141 = vld [vmem:[#allocation2 + $0x230] sm:$0xff]
    %v142 = vld [vmem:[#allocation2 + $0x238] sm:$0xff]
    %v143 = vld [vmem:[#allocation2 + $0x240] sm:$0xff]
    %v144 = vld [vmem:[#allocation2 + $0x248] sm:$0xff]
    %v145 = vld [vmem:[#allocation2 + $0x250] sm:$0xff]
    %v146 = vld [vmem:[#allocation2 + $0x258] sm:$0xff]
    %v147 = vld [vmem:[#allocation2 + $0x260] sm:$0xff]
    %v148 = vld [vmem:[#allocation2 + $0x268] sm:$0xff]
    %v149 = vld [vmem:[#allocation2 + $0x270] sm:$0xff]
    %v150 = vld [vmem:[#allocation2 + $0x278] sm:$0xff]
    %v151 = vld [vmem:[#allocation2 + $0x280] sm:$0xff]
    %v152 = vld [vmem:[#allocation2 + $0x288] sm:$0xff]
    %v153 = vld [vmem:[#allocation2 + $0x290] sm:$0xff]
    %v154 = vld [vmem:[#allocation2 + $0x298] sm:$0xff]
    %v155 = vld [vmem:[#allocation2 + $0x2a0] sm:$0xff]
    %v156 = vld [vmem:[#allocation2 + $0x2a8] sm:$0xff]
    %v157 = vld [vmem:[#allocation2 + $0x2b0] sm:$0xff]
    %v158 = vld [vmem:[#allocation2 + $0x2b8] sm:$0xff]
    %v159 = vld [vmem:[#allocation2 + $0x2c0] sm:$0xff]
    %v160 = vld [vmem:[#allocation2 + $0x2c8] sm:$0xff]
    %v161 = vld [vmem:[#allocation2 + $0x2d0] sm:$0xff]
    %v162 = vld [vmem:[#allocation2 + $0x2d8] sm:$0xff]
    %v163 = vld [vmem:[#allocation2 + $0x2e0] sm:$0xff]
    %v164 = vld [vmem:[#allocation2 + $0x2e8] sm:$0xff]
    %v165 = vld [vmem:[#allocation2 + $0x2f0] sm:$0xff]
    %v166 = vld [vmem:[#allocation2 + $0x2f8] sm:$0xff]
    %v167 = vld [vmem:[#allocation2 + $0x300] sm:$0xff]
    %v168 = vld [vmem:[#allocation2 + $0x308] sm:$0xff]
    %v169 = vld [vmem:[#allocation2 + $0x310] sm:$0xff]
    %v170 = vld [vmem:[#allocation2 + $0x318] sm:$0xff]
    %v171 = vld [vmem:[#allocation2 + $0x320] sm:$0xff]
    %v172 = vld [vmem:[#allocation2 + $0x328] sm:$0xff]
    %v173 = vld [vmem:[#allocation2 + $0x330] sm:$0xff]
    %v174 = vld [vmem:[#allocation2 + $0x338] sm:$0xff]
    %v175 = vld [vmem:[#allocation2 + $0x340] sm:$0xff]
    %v176 = vld [vmem:[#allocation2 + $0x348] sm:$0xff]
    %v177 = vld [vmem:[#allocation2 + $0x350] sm:$0xff]
    %v178 = vld [vmem:[#allocation2 + $0x358] sm:$0xff]
    %v179 = vld [vmem:[#allocation2 + $0x360] sm:$0xff]
    %v180 = vld [vmem:[#allocation2 + $0x368] sm:$0xff]
    %v181 = vld [vmem:[#allocation2 + $0x370] sm:$0xff]
    %v182 = vld [vmem:[#allocation2 + $0x378] sm:$0xff]
    %v183 = vld [vmem:[#allocation2 + $0x380] sm:$0xff]
    %v184 = vld [vmem:[#allocation2 + $0x388] sm:$0xff]
    %v185 = vld [vmem:[#allocation2 + $0x390] sm:$0xff]
    %v186 = vld [vmem:[#allocation2 + $0x398] sm:$0xff]
    %v187 = vld [vmem:[#allocation2 + $0x3a0] sm:$0xff]
    %v188 = vld [vmem:[#allocation2 + $0x3a8] sm:$0xff]
    %v189 = vld [vmem:[#allocation2 + $0x3b0] sm:$0xff]
    %v190 = vld [vmem:[#allocation2 + $0x3b8] sm:$0xff]
    %v191 = vld [vmem:[#allocation2 + $0x3c0] sm:$0xff]
    %v192 = vld [vmem:[#allocation2 + $0x3c8] sm:$0xff]
    %v193 = vld [vmem:[#allocation2 + $0x3d0] sm:$0xff]
    %v194 = vld [vmem:[#allocation2 + $0x3d8] sm:$0xff]
    %v195 = vld [vmem:[#allocation2 + $0x3e0] sm:$0xff]
    %v196 = vld [vmem:[#allocation2 + $0x3e8] sm:$0xff]
    %v197 = vld [vmem:[#allocation2 + $0x3f0] sm:$0xff]
    %v198 = vld [vmem:[#allocation2 + $0x3f8] sm:$0xff]
    %199 = vmatprep.subr.mxu0 %v72
    %200 = vmatpush1.msra.mxu0 %v71
    %201 = vmatprep.subr.mxu0 %v80
    %202 = vmatpush1.msra.mxu0 %v79
    %203 = vmatprep.subr.mxu0 %v88
    %204 = vmatpush1.msra.mxu0 %v87
    %205 = vmatprep.subr.mxu0 %v96
    %206 = vmatpush1.msra.mxu0 %v95
    %207 = vmatprep.subr.mxu0 %v104
    %208 = vmatpush1.msra.mxu0 %v103
    %209 = vmatprep.subr.mxu0 %v112
    %210 = vmatpush1.msra.mxu0 %v111
    %211 = vmatprep.subr.mxu0 %v120
    %212 = vmatpush1.msra.mxu0 %v119
    %213 = vmatprep.subr.mxu0 %v128
    %214 = vmatpush1.msra.mxu0 %v127
    %215 = vmatprep.subr.mxu0 %v136
    %216 = vmatpush1.msra.mxu0 %v135
    %217 = vmatprep.subr.mxu0 %v144
    %218 = vmatpush1.msra.mxu0 %v143
    %219 = vmatprep.subr.mxu0 %v152
    %220 = vmatpush1.msra.mxu0 %v151
    %221 = vmatprep.subr.mxu0 %v160
    %222 = vmatpush1.msra.mxu0 %v159
    %223 = vmatprep.subr.mxu0 %v168
    %224 = vmatpush1.msra.mxu0 %v167
    %225 = vmatprep.subr.mxu0 %v176
    %226 = vmatpush1.msra.mxu0 %v175
    %227 = vmatprep.subr.mxu0 %v184
    %228 = vmatpush1.msra.mxu0 %v183
    %229 = vmatprep.subr.mxu0 %v192
    %230 = vmatpush1.msra.mxu0 %v191
    %231 = vmatprep.subr.mxu0 0.0
    %232 = vmatpush1.msra.mxu0 0.0
    %233 = vmatprep.subr.mxu0 0.0
    %234 = vmatpush1.msra.mxu0 0.0
    %235 = vmatprep.subr.mxu0 0.0
    %236 = vmatpush1.msra.mxu0 0.0
    %237 = vmatprep.subr.mxu0 0.0
    %238 = vmatpush1.msra.mxu0 0.0
    %239 = vmatprep.subr.mxu0 0.0
    %240 = vmatpush1.msra.mxu0 0.0
    %241 = vmatprep.subr.mxu0 0.0
    %242 = vmatpush1.msra.mxu0 0.0
    %243 = vmatprep.subr.mxu0 0.0
    %244 = vmatpush1.msra.mxu0 0.0
    %245 = vmatprep.subr.mxu0 0.0
    %246 = vmatpush1.msra.mxu0 0.0
    %247 = vmatprep.subr.mxu0 0.0
    %248 = vmatpush1.msra.mxu0 0.0
    %249 = vmatprep.subr.mxu0 0.0
    %250 = vmatpush1.msra.mxu0 0.0
    %251 = vmatprep.subr.mxu0 0.0
    %252 = vmatpush1.msra.mxu0 0.0
    %253 = vmatprep.subr.mxu0 0.0
    %254 = vmatpush1.msra.mxu0 0.0
    %255 = vmatprep.subr.mxu0 0.0
    %256 = vmatpush1.msra.mxu0 0.0
    %257 = vmatprep.subr.mxu0 0.0
    %258 = vmatpush1.msra.mxu0 0.0
    %259 = vmatprep.subr.mxu0 0.0
    %260 = vmatpush1.msra.mxu0 0.0
    %261 = vmatprep.subr.mxu0 0.0
    %262 = vmatpush1.msra.mxu0 0.0
    %263 = vmatprep.mubr.f32.mxu0 0.0
    %264 = vmatmul.mubr.f32.gmra.mrb[0].mxu0 %v69
    %v265 = vpop.f32.mrb[0].mxu0
    %v266 = vadd.f32 0.0, %v265
    %v267 = vpop.f32.mrb[0].mxu0
    %v268 = vadd.f32 0.0, %v267
    %269 = vmatprep.mubr.f32.mxu0 0.0
    %270 = vmatmul.mubr.f32.gmra.mrb[0].mxu0 %v70
    %v271 = vpop.f32.mrb[0].mxu0
    %v272 = vadd.f32 0.0, %v271
    %v273 = vpop.f32.mrb[0].mxu0
    %v274 = vadd.f32 0.0, %v273
    %275 = vdwg.mxu0
    %276 = vmatprep.subr.mxu0 %v74
    %277 = vmatpush1.msra.mxu0 %v73
    %278 = vmatprep.subr.mxu0 %v82
    %279 = vmatpush1.msra.mxu0 %v81
    %280 = vmatprep.subr.mxu0 %v90
    %281 = vmatpush1.msra.mxu0 %v89
    %282 = vmatprep.subr.mxu0 %v98
    %283 = vmatpush1.msra.mxu0 %v97
    %284 = vmatprep.subr.mxu0 %v106
    %285 = vmatpush1.msra.mxu0 %v105
    %286 = vmatprep.subr.mxu0 %v114
    %287 = vmatpush1.msra.mxu0 %v113
    %288 = vmatprep.subr.mxu0 %v122
    %289 = vmatpush1.msra.mxu0 %v121
    %290 = vmatprep.subr.mxu0 %v130
    %291 = vmatpush1.msra.mxu0 %v129
    %292 = vmatprep.subr.mxu0 %v138
    %293 = vmatpush1.msra.mxu0 %v137
    %294 = vmatprep.subr.mxu0 %v146
    %295 = vmatpush1.msra.mxu0 %v145
    %296 = vmatprep.subr.mxu0 %v154
    %297 = vmatpush1.msra.mxu0 %v153
    %298 = vmatprep.subr.mxu0 %v162
    %299 = vmatpush1.msra.mxu0 %v161
    %300 = vmatprep.subr.mxu0 %v170
    %301 = vmatpush1.msra.mxu0 %v169
    %302 = vmatprep.subr.mxu0 %v178
    %303 = vmatpush1.msra.mxu0 %v177
    %304 = vmatprep.subr.mxu0 %v186
    %305 = vmatpush1.msra.mxu0 %v185
    %306 = vmatprep.subr.mxu0 %v194
    %307 = vmatpush1.msra.mxu0 %v193
    %308 = vmatprep.subr.mxu0 0.0
    %309 = vmatpush1.msra.mxu0 0.0
    %310 = vmatprep.subr.mxu0 0.0
    %311 = vmatpush1.msra.mxu0 0.0
    %312 = vmatprep.subr.mxu0 0.0
    %313 = vmatpush1.msra.mxu0 0.0
    %314 = vmatprep.subr.mxu0 0.0
    %315 = vmatpush1.msra.mxu0 0.0
    %316 = vmatprep.subr.mxu0 0.0
    %317 = vmatpush1.msra.mxu0 0.0
    %318 = vmatprep.subr.mxu0 0.0
    %319 = vmatpush1.msra.mxu0 0.0
    %320 = vmatprep.subr.mxu0 0.0
    %321 = vmatpush1.msra.mxu0 0.0
    %322 = vmatprep.subr.mxu0 0.0
    %323 = vmatpush1.msra.mxu0 0.0
    %324 = vmatprep.subr.mxu0 0.0
    %325 = vmatpush1.msra.mxu0 0.0
    %326 = vmatprep.subr.mxu0 0.0
    %327 = vmatpush1.msra.mxu0 0.0
    %328 = vmatprep.subr.mxu0 0.0
    %329 = vmatpush1.msra.mxu0 0.0
    %330 = vmatprep.subr.mxu0 0.0
    %331 = vmatpush1.msra.mxu0 0.0
    %332 = vmatprep.subr.mxu0 0.0
    %333 = vmatpush1.msra.mxu0 0.0
    %334 = vmatprep.subr.mxu0 0.0
    %335 = vmatpush1.msra.mxu0 0.0
    %336 = vmatprep.subr.mxu0 0.0
    %337 = vmatpush1.msra.mxu0 0.0
    %338 = vmatprep.subr.mxu0 0.0
    %339 = vmatpush1.msra.mxu0 0.0
    %340 = vmatprep.mubr.f32.mxu0 0.0
    %341 = vmatmul.mubr.f32.gmra.mrb[0].mxu0 %v69
    %v342 = vpop.f32.mrb[0].mxu0
    %v343 = vadd.f32 0.0, %v342
    %v344 = vpop.f32.mrb[0].mxu0
    %v345 = vadd.f32 0.0, %v344
    %346 = vmatprep.mubr.f32.mxu0 0.0
    %347 = vmatmul.mubr.f32.gmra.mrb[0].mxu0 %v70
    %v348 = vpop.f32.mrb[0].mxu0
    %v349 = vadd.f32 0.0, %v348
    %v350 = vpop.f32.mrb[0].mxu0
    %v351 = vadd.f32 0.0, %v350
    %352 = vdwg.mxu0
    %353 = vmatprep.subr.mxu0 %v76
    %354 = vmatpush1.msra.mxu0 %v75
    %355 = vmatprep.subr.mxu0 %v84
    %356 = vmatpush1.msra.mxu0 %v83
    %357 = vmatprep.subr.mxu0 %v92
    %358 = vmatpush1.msra.mxu0 %v91
    %359 = vmatprep.subr.mxu0 %v100
    %360 = vmatpush1.msra.mxu0 %v99
    %361 = vmatprep.subr.mxu0 %v108
    %362 = vmatpush1.msra.mxu0 %v107
    %363 = vmatprep.subr.mxu0 %v116
    %364 = vmatpush1.msra.mxu0 %v115
    %365 = vmatprep.subr.mxu0 %v124
    %366 = vmatpush1.msra.mxu0 %v123
    %367 = vmatprep.subr.mxu0 %v132
    %368 = vmatpush1.msra.mxu0 %v131
    %369 = vmatprep.subr.mxu0 %v140
    %370 = vmatpush1.msra.mxu0 %v139
    %371 = vmatprep.subr.mxu0 %v148
    %372 = vmatpush1.msra.mxu0 %v147
    %373 = vmatprep.subr.mxu0 %v156
    %374 = vmatpush1.msra.mxu0 %v155
    %375 = vmatprep.subr.mxu0 %v164
    %376 = vmatpush1.msra.mxu0 %v163
    %377 = vmatprep.subr.mxu0 %v172
    %378 = vmatpush1.msra.mxu0 %v171
    %379 = vmatprep.subr.mxu0 %v180
    %380 = vmatpush1.msra.mxu0 %v179
    %381 = vmatprep.subr.mxu0 %v188
    %382 = vmatpush1.msra.mxu0 %v187
    %383 = vmatprep.subr.mxu0 %v196
    %384 = vmatpush1.msra.mxu0 %v195
    %385 = vmatprep.subr.mxu0 0.0
    %386 = vmatpush1.msra.mxu0 0.0
    %387 = vmatprep.subr.mxu0 0.0
    %388 = vmatpush1.msra.mxu0 0.0
    %389 = vmatprep.subr.mxu0 0.0
    %390 = vmatpush1.msra.mxu0 0.0
    %391 = vmatprep.subr.mxu0 0.0
    %392 = vmatpush1.msra.mxu0 0.0
    %393 = vmatprep.subr.mxu0 0.0
    %394 = vmatpush1.msra.mxu0 0.0
    %395 = vmatprep.subr.mxu0 0.0
    %396 = vmatpush1.msra.mxu0 0.0
    %397 = vmatprep.subr.mxu0 0.0
    %398 = vmatpush1.msra.mxu0 0.0
    %399 = vmatprep.subr.mxu0 0.0
    %400 = vmatpush1.msra.mxu0 0.0
    %401 = vmatprep.subr.mxu0 0.0
    %402 = vmatpush1.msra.mxu0 0.0
    %403 = vmatprep.subr.mxu0 0.0
    %404 = vmatpush1.msra.mxu0 0.0
    %405 = vmatprep.subr.mxu0 0.0
    %406 = vmatpush1.msra.mxu0 0.0
    %407 = vmatprep.subr.mxu0 0.0
    %408 = vmatpush1.msra.mxu0 0.0
    %409 = vmatprep.subr.mxu0 0.0
    %410 = vmatpush1.msra.mxu0 0.0
    %411 = vmatprep.subr.mxu0 0.0
    %412 = vmatpush1.msra.mxu0 0.0
    %413 = vmatprep.subr.mxu0 0.0
    %414 = vmatpush1.msra.mxu0 0.0
    %415 = vmatprep.subr.mxu0 0.0
    %416 = vmatpush1.msra.mxu0 0.0
    %417 = vmatprep.mubr.f32.mxu0 0.0
    %418 = vmatmul.mubr.f32.gmra.mrb[0].mxu0 %v69
    %v419 = vpop.f32.mrb[0].mxu0
    %v420 = vadd.f32 0.0, %v419
    %v421 = vpop.f32.mrb[0].mxu0
    %v422 = vadd.f32 0.0, %v421
    %423 = vmatprep.mubr.f32.mxu0 0.0
    %424 = vmatmul.mubr.f32.gmra.mrb[0].mxu0 %v70
    %v425 = vpop.f32.mrb[0].mxu0
    %v426 = vadd.f32 0.0, %v425
    %v427 = vpop.f32.mrb[0].mxu0
    %v428 = vadd.f32 0.0, %v427
    %429 = vdwg.mxu0
    %430 = vmatprep.subr.mxu0 %v78
    %431 = vmatpush1.msra.mxu0 %v77
    %432 = vmatprep.subr.mxu0 %v86
    %433 = vmatpush1.msra.mxu0 %v85
    %434 = vmatprep.subr.mxu0 %v94
    %435 = vmatpush1.msra.mxu0 %v93
    %436 = vmatprep.subr.mxu0 %v102
    %437 = vmatpush1.msra.mxu0 %v101
    %438 = vmatprep.subr.mxu0 %v110
    %439 = vmatpush1.msra.mxu0 %v109
    %440 = vmatprep.subr.mxu0 %v118
    %441 = vmatpush1.msra.mxu0 %v117
    %442 = vmatprep.subr.mxu0 %v126
    %443 = vmatpush1.msra.mxu0 %v125
    %444 = vmatprep.subr.mxu0 %v134
    %445 = vmatpush1.msra.mxu0 %v133
    %446 = vmatprep.subr.mxu0 %v142
    %447 = vmatpush1.msra.mxu0 %v141
    %448 = vmatprep.subr.mxu0 %v150
    %449 = vmatpush1.msra.mxu0 %v149
    %450 = vmatprep.subr.mxu0 %v158
    %451 = vmatpush1.msra.mxu0 %v157
    %452 = vmatprep.subr.mxu0 %v166
    %453 = vmatpush1.msra.mxu0 %v165
    %454 = vmatprep.subr.mxu0 %v174
    %455 = vmatpush1.msra.mxu0 %v173
    %456 = vmatprep.subr.mxu0 %v182
    %457 = vmatpush1.msra.mxu0 %v181
    %458 = vmatprep.subr.mxu0 %v190
    %459 = vmatpush1.msra.mxu0 %v189
    %460 = vmatprep.subr.mxu0 %v198
    %461 = vmatpush1.msra.mxu0 %v197
    %462 = vmatprep.subr.mxu0 0.0
    %463 = vmatpush1.msra.mxu0 0.0
    %464 = vmatprep.subr.mxu0 0.0
    %465 = vmatpush1.msra.mxu0 0.0
    %466 = vmatprep.subr.mxu0 0.0
    %467 = vmatpush1.msra.mxu0 0.0
    %468 = vmatprep.subr.mxu0 0.0
    %469 = vmatpush1.msra.mxu0 0.0
    %470 = vmatprep.subr.mxu0 0.0
    %471 = vmatpush1.msra.mxu0 0.0
    %472 = vmatprep.subr.mxu0 0.0
    %473 = vmatpush1.msra.mxu0 0.0
    %474 = vmatprep.subr.mxu0 0.0
    %475 = vmatpush1.msra.mxu0 0.0
    %476 = vmatprep.subr.mxu0 0.0
    %477 = vmatpush1.msra.mxu0 0.0
    %478 = vmatprep.subr.mxu0 0.0
    %479 = vmatpush1.msra.mxu0 0.0
    %480 = vmatprep.subr.mxu0 0.0
    %481 = vmatpush1.msra.mxu0 0.0
    %482 = vmatprep.subr.mxu0 0.0
    %483 = vmatpush1.msra.mxu0 0.0
    %484 = vmatprep.subr.mxu0 0.0
    %485 = vmatpush1.msra.mxu0 0.0
    %486 = vmatprep.subr.mxu0 0.0
    %487 = vmatpush1.msra.mxu0 0.0
    %488 = vmatprep.subr.mxu0 0.0
    %489 = vmatpush1.msra.mxu0 0.0
    %490 = vmatprep.subr.mxu0 0.0
    %491 = vmatpush1.msra.mxu0 0.0
    %492 = vmatprep.subr.mxu0 0.0
    %493 = vmatpush1.msra.mxu0 0.0
    %494 = vmatprep.mubr.f32.mxu0 0.0
    %495 = vmatmul.mubr.f32.gmra.mrb[0].mxu0 %v69
    %v496 = vpop.f32.mrb[0].mxu0
    %v497 = vadd.f32 0.0, %v496
    %v498 = vpop.f32.mrb[0].mxu0
    %v499 = vadd.f32 0.0, %v498
    %500 = vmatprep.mubr.f32.mxu0 0.0
    %501 = vmatmul.mubr.f32.gmra.mrb[0].mxu0 %v70
    %v502 = vpop.f32.mrb[0].mxu0
    %v503 = vadd.f32 0.0, %v502
    %v504 = vpop.f32.mrb[0].mxu0
    %v505 = vadd.f32 0.0, %v504
    %506 = vdwg.mxu0
    %v507 = vld [vmem:[#allocation4] sm:$0xff]
    %v508 = vld [vmem:[#allocation4 + $0x8] sm:$0xff]
    %v509 = vld [vmem:[#allocation4 + $0x10] sm:$0xff]
    %v510 = vld [vmem:[#allocation4 + $0x18] sm:$0xff]
    %v511 = vld [vmem:[#allocation4 + $0x20] sm:$0xff]
    %v512 = vld [vmem:[#allocation4 + $0x28] sm:$0xff]
    %v513 = vld [vmem:[#allocation4 + $0x30] sm:$0xff]
    %v514 = vld [vmem:[#allocation4 + $0x38] sm:$0xff]
    %v515 = vld [vmem:[#allocation4 + $0x40] sm:$0xff]
    %v516 = vld [vmem:[#allocation4 + $0x48] sm:$0xff]
    %v517 = vld [vmem:[#allocation4 + $0x50] sm:$0xff]
    %v518 = vld [vmem:[#allocation4 + $0x58] sm:$0xff]
    %v519 = vld [vmem:[#allocation4 + $0x60] sm:$0xff]
    %v520 = vld [vmem:[#allocation4 + $0x68] sm:$0xff]
    %v521 = vld [vmem:[#allocation4 + $0x70] sm:$0xff]
    %v522 = vld [vmem:[#allocation4 + $0x78] sm:$0xff]
    %v523 = vld [vmem:[#allocation4 + $0x80] sm:$0xff]
    %v524 = vld [vmem:[#allocation4 + $0x88] sm:$0xff]
    %v525 = vld [vmem:[#allocation4 + $0x90] sm:$0xff]
    %v526 = vld [vmem:[#allocation4 + $0x98] sm:$0xff]
    %v527 = vld [vmem:[#allocation4 + $0xa0] sm:$0xff]
    %v528 = vld [vmem:[#allocation4 + $0xa8] sm:$0xff]
    %v529 = vld [vmem:[#allocation4 + $0xb0] sm:$0xff]
    %v530 = vld [vmem:[#allocation4 + $0xb8] sm:$0xff]
    %v531 = vld [vmem:[#allocation4 + $0xc0] sm:$0xff]
    %v532 = vld [vmem:[#allocation4 + $0xc8] sm:$0xff]
    %v533 = vld [vmem:[#allocation4 + $0xd0] sm:$0xff]
    %v534 = vld [vmem:[#allocation4 + $0xd8] sm:$0xff]
    %v535 = vld [vmem:[#allocation4 + $0xe0] sm:$0xff]
    %v536 = vld [vmem:[#allocation4 + $0xe8] sm:$0xff]
    %v537 = vld [vmem:[#allocation4 + $0xf0] sm:$0xff]
    %v538 = vld [vmem:[#allocation4 + $0xf8] sm:$0xff]
    %v539 = vld [vmem:[#allocation4 + $0x100] sm:$0xff]
    %v540 = vld [vmem:[#allocation4 + $0x108] sm:$0xff]
    %v541 = vld [vmem:[#allocation4 + $0x110] sm:$0xff]
    %v542 = vld [vmem:[#allocation4 + $0x118] sm:$0xff]
    %v543 = vld [vmem:[#allocation4 + $0x120] sm:$0xff]
    %v544 = vld [vmem:[#allocation4 + $0x128] sm:$0xff]
    %v545 = vld [vmem:[#allocation4 + $0x130] sm:$0xff]
    %v546 = vld [vmem:[#allocation4 + $0x138] sm:$0xff]
    %v547 = vld [vmem:[#allocation4 + $0x140] sm:$0xff]
    %v548 = vld [vmem:[#allocation4 + $0x148] sm:$0xff]
    %v549 = vld [vmem:[#allocation4 + $0x150] sm:$0xff]
    %v550 = vld [vmem:[#allocation4 + $0x158] sm:$0xff]
    %v551 = vld [vmem:[#allocation4 + $0x160] sm:$0xff]
    %v552 = vld [vmem:[#allocation4 + $0x168] sm:$0xff]
    %v553 = vld [vmem:[#allocation4 + $0x170] sm:$0xff]
    %v554 = vld [vmem:[#allocation4 + $0x178] sm:$0xff]
    %v555 = vld [vmem:[#allocation4 + $0x180] sm:$0xff]
    %v556 = vld [vmem:[#allocation4 + $0x188] sm:$0xff]
    %v557 = vld [vmem:[#allocation4 + $0x190] sm:$0xff]
    %v558 = vld [vmem:[#allocation4 + $0x198] sm:$0xff]
    %v559 = vld [vmem:[#allocation4 + $0x1a0] sm:$0xff]
    %v560 = vld [vmem:[#allocation4 + $0x1a8] sm:$0xff]
    %v561 = vld [vmem:[#allocation4 + $0x1b0] sm:$0xff]
    %v562 = vld [vmem:[#allocation4 + $0x1b8] sm:$0xff]
    %v563 = vld [vmem:[#allocation4 + $0x1c0] sm:$0xff]
    %v564 = vld [vmem:[#allocation4 + $0x1c8] sm:$0xff]
    %v565 = vld [vmem:[#allocation4 + $0x1d0] sm:$0xff]
    %v566 = vld [vmem:[#allocation4 + $0x1d8] sm:$0xff]
    %v567 = vld [vmem:[#allocation4 + $0x1e0] sm:$0xff]
    %v568 = vld [vmem:[#allocation4 + $0x1e8] sm:$0xff]
    %v569 = vld [vmem:[#allocation4 + $0x1f0] sm:$0xff]
    %v570 = vld [vmem:[#allocation4 + $0x1f8] sm:$0xff]
    %v571 = vld [vmem:[%s1] sm:$0xff]
    %v572 = vld [vmem:[%s1 + $0x8] sm:$0xff]
    %v573 = vld [vmem:[%s1 + $0x10] sm:$0xff]
    %v574 = vld [vmem:[%s1 + $0x18] sm:$0xff]
    %v575 = vld [vmem:[%s1 + $0x20] sm:$0xff]
    %v576 = vld [vmem:[%s1 + $0x28] sm:$0xff]
    %v577 = vld [vmem:[%s1 + $0x30] sm:$0xff]
    %v578 = vld [vmem:[%s1 + $0x38] sm:$0xff]
    %v579 = vld [vmem:[%s1 + $0x40] sm:$0xff]
    %v580 = vld [vmem:[%s1 + $0x48] sm:$0xff]
    %v581 = vld [vmem:[%s1 + $0x50] sm:$0xff]
    %v582 = vld [vmem:[%s1 + $0x58] sm:$0xff]
    %v583 = vld [vmem:[%s1 + $0x60] sm:$0xff]
    %v584 = vld [vmem:[%s1 + $0x68] sm:$0xff]
    %v585 = vld [vmem:[%s1 + $0x70] sm:$0xff]
    %v586 = vld [vmem:[%s1 + $0x78] sm:$0xff]
    %587 = vmatprep.subr.mxu0 0.0
    %588 = vmatpush1.msra.mxu0 %v571
    %589 = vmatprep.subr.mxu0 0.0
    %590 = vmatpush1.msra.mxu0 %v572
    %591 = vmatprep.subr.mxu0 0.0
    %592 = vmatpush1.msra.mxu0 %v573
    %593 = vmatprep.subr.mxu0 0.0
    %594 = vmatpush1.msra.mxu0 %v574
    %595 = vmatprep.subr.mxu0 0.0
    %596 = vmatpush1.msra.mxu0 %v575
    %597 = vmatprep.subr.mxu0 0.0
    %598 = vmatpush1.msra.mxu0 %v576
    %599 = vmatprep.subr.mxu0 0.0
    %600 = vmatpush1.msra.mxu0 %v577
    %601 = vmatprep.subr.mxu0 0.0
    %602 = vmatpush1.msra.mxu0 %v578
    %603 = vmatprep.subr.mxu0 0.0
    %604 = vmatpush1.msra.mxu0 %v579
    %605 = vmatprep.subr.mxu0 0.0
    %606 = vmatpush1.msra.mxu0 %v580
    %607 = vmatprep.subr.mxu0 0.0
    %608 = vmatpush1.msra.mxu0 %v581
    %609 = vmatprep.subr.mxu0 0.0
    %610 = vmatpush1.msra.mxu0 %v582
    %611 = vmatprep.subr.mxu0 0.0
    %612 = vmatpush1.msra.mxu0 %v583
    %613 = vmatprep.subr.mxu0 0.0
    %614 = vmatpush1.msra.mxu0 %v584
    %615 = vmatprep.subr.mxu0 0.0
    %616 = vmatpush1.msra.mxu0 %v585
    %617 = vmatprep.subr.mxu0 0.0
    %618 = vmatpush1.msra.mxu0 %v586
    %619 = vmatprep.subr.mxu0 0.0
    %620 = vmatpush1.msra.mxu0 0.0
    %621 = vmatprep.subr.mxu0 0.0
    %622 = vmatpush1.msra.mxu0 0.0
    %623 = vmatprep.subr.mxu0 0.0
    %624 = vmatpush1.msra.mxu0 0.0
    %625 = vmatprep.subr.mxu0 0.0
    %626 = vmatpush1.msra.mxu0 0.0
    %627 = vmatprep.subr.mxu0 0.0
    %628 = vmatpush1.msra.mxu0 0.0
    %629 = vmatprep.subr.mxu0 0.0
    %630 = vmatpush1.msra.mxu0 0.0
    %631 = vmatprep.subr.mxu0 0.0
    %632 = vmatpush1.msra.mxu0 0.0
    %633 = vmatprep.subr.mxu0 0.0
    %634 = vmatpush1.msra.mxu0 0.0
    %635 = vmatprep.subr.mxu0 0.0
    %636 = vmatpush1.msra.mxu0 0.0
    %637 = vmatprep.subr.mxu0 0.0
    %638 = vmatpush1.msra.mxu0 0.0
    %639 = vmatprep.subr.mxu0 0.0
    %640 = vmatpush1.msra.mxu0 0.0
    %641 = vmatprep.subr.mxu0 0.0
    %642 = vmatpush1.msra.mxu0 0.0
    %643 = vmatprep.subr.mxu0 0.0
    %644 = vmatpush1.msra.mxu0 0.0
    %645 = vmatprep.subr.mxu0 0.0
    %646 = vmatpush1.msra.mxu0 0.0
    %647 = vmatprep.subr.mxu0 0.0
    %648 = vmatpush1.msra.mxu0 0.0
    %649 = vmatprep.subr.mxu0 0.0
    %650 = vmatpush1.msra.mxu0 0.0
    %651 = vmatprep.mubr.f32.mxu0 0.0
    %652 = vmatmul.mubr.f32.gmra.mrb[0].mxu0 %v507
    %v653 = vpop.f32.mrb[0].mxu0
    %v654 = vadd.f32 0.0, %v653
    %v655 = vpop.f32.mrb[0].mxu0
    %656 = vmatprep.mubr.f32.mxu0 0.0
    %657 = vmatmul.mubr.f32.gmra.mrb[0].mxu0 %v508
    %v658 = vpop.f32.mrb[0].mxu0
    %v659 = vadd.f32 0.0, %v658
    %v660 = vpop.f32.mrb[0].mxu0
    %661 = vmatprep.mubr.f32.mxu0 0.0
    %662 = vmatmul.mubr.f32.gmra.mrb[0].mxu0 %v509
    %v663 = vpop.f32.mrb[0].mxu0
    %v664 = vadd.f32 0.0, %v663
    %v665 = vpop.f32.mrb[0].mxu0
    %666 = vmatprep.mubr.f32.mxu0 0.0
    %667 = vmatmul.mubr.f32.gmra.mrb[0].mxu0 %v510
    %v668 = vpop.f32.mrb[0].mxu0
    %v669 = vadd.f32 0.0, %v668
    %v670 = vpop.f32.mrb[0].mxu0
    %671 = vmatprep.mubr.f32.mxu0 0.0
    %672 = vmatmul.mubr.f32.gmra.mrb[0].mxu0 %v511
    %v673 = vpop.f32.mrb[0].mxu0
    %v674 = vadd.f32 0.0, %v673
    %v675 = vpop.f32.mrb[0].mxu0
    %676 = vmatprep.mubr.f32.mxu0 0.0
    %677 = vmatmul.mubr.f32.gmra.mrb[0].mxu0 %v512
    %v678 = vpop.f32.mrb[0].mxu0
    %v679 = vadd.f32 0.0, %v678
    %v680 = vpop.f32.mrb[0].mxu0
    %681 = vmatprep.mubr.f32.mxu0 0.0
    %682 = vmatmul.mubr.f32.gmra.mrb[0].mxu0 %v513
    %v683 = vpop.f32.mrb[0].mxu0
    %v684 = vadd.f32 0.0, %v683
    %v685 = vpop.f32.mrb[0].mxu0
    %686 = vmatprep.mubr.f32.mxu0 0.0
    %687 = vmatmul.mubr.f32.gmra.mrb[0].mxu0 %v514
    %v688 = vpop.f32.mrb[0].mxu0
    %v689 = vadd.f32 0.0, %v688
    %v690 = vpop.f32.mrb[0].mxu0
    %691 = vmatprep.mubr.f32.mxu0 0.0
    %692 = vmatmul.mubr.f32.gmra.mrb[0].mxu0 %v515
    %v693 = vpop.f32.mrb[0].mxu0
    %v694 = vadd.f32 0.0, %v693
    %v695 = vpop.f32.mrb[0].mxu0
    %696 = vmatprep.mubr.f32.mxu0 0.0
    %697 = vmatmul.mubr.f32.gmra.mrb[0].mxu0 %v516
    %v698 = vpop.f32.mrb[0].mxu0
    %v699 = vadd.f32 0.0, %v698
    %v700 = vpop.f32.mrb[0].mxu0
    %701 = vmatprep.mubr.f32.mxu0 0.0
    %702 = vmatmul.mubr.f32.gmra.mrb[0].mxu0 %v517
    %v703 = vpop.f32.mrb[0].mxu0
    %v704 = vadd.f32 0.0, %v703
    %v705 = vpop.f32.mrb[0].mxu0
    %706 = vmatprep.mubr.f32.mxu0 0.0
    %707 = vmatmul.mubr.f32.gmra.mrb[0].mxu0 %v518
    %v708 = vpop.f32.mrb[0].mxu0
    %v709 = vadd.f32 0.0, %v708
    %v710 = vpop.f32.mrb[0].mxu0
    %711 = vmatprep.mubr.f32.mxu0 0.0
    %712 = vmatmul.mubr.f32.gmra.mrb[0].mxu0 %v519
    %v713 = vpop.f32.mrb[0].mxu0
    %v714 = vadd.f32 0.0, %v713
    %v715 = vpop.f32.mrb[0].mxu0
    %716 = vmatprep.mubr.f32.mxu0 0.0
    %717 = vmatmul.mubr.f32.gmra.mrb[0].mxu0 %v520
    %v718 = vpop.f32.mrb[0].mxu0
    %v719 = vadd.f32 0.0, %v718
    %v720 = vpop.f32.mrb[0].mxu0
    %721 = vmatprep.mubr.f32.mxu0 0.0
    %722 = vmatmul.mubr.f32.gmra.mrb[0].mxu0 %v521
    %v723 = vpop.f32.mrb[0].mxu0
    %v724 = vadd.f32 0.0, %v723
    %v725 = vpop.f32.mrb[0].mxu0
    %726 = vmatprep.mubr.f32.mxu0 0.0
    %727 = vmatmul.mubr.f32.gmra.mrb[0].mxu0 %v522
    %v728 = vpop.f32.mrb[0].mxu0
    %v729 = vadd.f32 0.0, %v728
    %v730 = vpop.f32.mrb[0].mxu0
    %731 = vmatprep.mubr.f32.mxu0 0.0
    %732 = vmatmul.mubr.f32.gmra.mrb[0].mxu0 %v523
    %v733 = vpop.f32.mrb[0].mxu0
    %v734 = vadd.f32 0.0, %v733
    %v735 = vpop.f32.mrb[0].mxu0
    %736 = vmatprep.mubr.f32.mxu0 0.0
    %737 = vmatmul.mubr.f32.gmra.mrb[0].mxu0 %v524
    %v738 = vpop.f32.mrb[0].mxu0
    %v739 = vadd.f32 0.0, %v738
    %v740 = vpop.f32.mrb[0].mxu0
    %741 = vmatprep.mubr.f32.mxu0 0.0
    %742 = vmatmul.mubr.f32.gmra.mrb[0].mxu0 %v525
    %v743 = vpop.f32.mrb[0].mxu0
    %v744 = vadd.f32 0.0, %v743
    %v745 = vpop.f32.mrb[0].mxu0
    %746 = vmatprep.mubr.f32.mxu0 0.0
    %747 = vmatmul.mubr.f32.gmra.mrb[0].mxu0 %v526
    %v748 = vpop.f32.mrb[0].mxu0
    %v749 = vadd.f32 0.0, %v748
    %v750 = vpop.f32.mrb[0].mxu0
    %751 = vmatprep.mubr.f32.mxu0 0.0
    %752 = vmatmul.mubr.f32.gmra.mrb[0].mxu0 %v527
    %v753 = vpop.f32.mrb[0].mxu0
    %v754 = vadd.f32 0.0, %v753
    %v755 = vpop.f32.mrb[0].mxu0
    %756 = vmatprep.mubr.f32.mxu0 0.0
    %757 = vmatmul.mubr.f32.gmra.mrb[0].mxu0 %v528
    %v758 = vpop.f32.mrb[0].mxu0
    %v759 = vadd.f32 0.0, %v758
    %v760 = vpop.f32.mrb[0].mxu0
    %761 = vmatprep.mubr.f32.mxu0 0.0
    %762 = vmatmul.mubr.f32.gmra.mrb[0].mxu0 %v529
    %v763 = vpop.f32.mrb[0].mxu0
    %v764 = vadd.f32 0.0, %v763
    %v765 = vpop.f32.mrb[0].mxu0
    %766 = vmatprep.mubr.f32.mxu0 0.0
    %767 = vmatmul.mubr.f32.gmra.mrb[0].mxu0 %v530
    %v768 = vpop.f32.mrb[0].mxu0
    %v769 = vadd.f32 0.0, %v768
    %v770 = vpop.f32.mrb[0].mxu0
    %771 = vmatprep.mubr.f32.mxu0 0.0
    %772 = vmatmul.mubr.f32.gmra.mrb[0].mxu0 %v531
    %v773 = vpop.f32.mrb[0].mxu0
    %v774 = vadd.f32 0.0, %v773
    %v775 = vpop.f32.mrb[0].mxu0
    %776 = vmatprep.mubr.f32.mxu0 0.0
    %777 = vmatmul.mubr.f32.gmra.mrb[0].mxu0 %v532
    %v778 = vpop.f32.mrb[0].mxu0
    %v779 = vadd.f32 0.0, %v778
    %v780 = vpop.f32.mrb[0].mxu0
    %781 = vmatprep.mubr.f32.mxu0 0.0
    %782 = vmatmul.mubr.f32.gmra.mrb[0].mxu0 %v533
    %v783 = vpop.f32.mrb[0].mxu0
    %v784 = vadd.f32 0.0, %v783
    %v785 = vpop.f32.mrb[0].mxu0
    %786 = vmatprep.mubr.f32.mxu0 0.0
    %787 = vmatmul.mubr.f32.gmra.mrb[0].mxu0 %v534
    %v788 = vpop.f32.mrb[0].mxu0
    %v789 = vadd.f32 0.0, %v788
    %v790 = vpop.f32.mrb[0].mxu0
    %791 = vmatprep.mubr.f32.mxu0 0.0
    %792 = vmatmul.mubr.f32.gmra.mrb[0].mxu0 %v535
    %v793 = vpop.f32.mrb[0].mxu0
    %v794 = vadd.f32 0.0, %v793
    %v795 = vpop.f32.mrb[0].mxu0
    %796 = vmatprep.mubr.f32.mxu0 0.0
    %797 = vmatmul.mubr.f32.gmra.mrb[0].mxu0 %v536
    %v798 = vpop.f32.mrb[0].mxu0
    %v799 = vadd.f32 0.0, %v798
    %v800 = vpop.f32.mrb[0].mxu0
    %801 = vmatprep.mubr.f32.mxu0 0.0
    %802 = vmatmul.mubr.f32.gmra.mrb[0].mxu0 %v537
    %v803 = vpop.f32.mrb[0].mxu0
    %v804 = vadd.f32 0.0, %v803
    %v805 = vpop.f32.mrb[0].mxu0
    %806 = vmatprep.mubr.f32.mxu0 0.0
    %807 = vmatmul.mubr.f32.gmra.mrb[0].mxu0 %v538
    %v808 = vpop.f32.mrb[0].mxu0
    %v809 = vadd.f32 0.0, %v808
    %v810 = vpop.f32.mrb[0].mxu0
    %811 = vmatprep.mubr.f32.mxu0 0.0
    %812 = vmatmul.mubr.f32.gmra.mrb[0].mxu0 %v539
    %v813 = vpop.f32.mrb[0].mxu0
    %v814 = vadd.f32 0.0, %v813
    %v815 = vpop.f32.mrb[0].mxu0
    %816 = vmatprep.mubr.f32.mxu0 0.0
    %817 = vmatmul.mubr.f32.gmra.mrb[0].mxu0 %v540
    %v818 = vpop.f32.mrb[0].mxu0
    %v819 = vadd.f32 0.0, %v818
    %v820 = vpop.f32.mrb[0].mxu0
    %821 = vmatprep.mubr.f32.mxu0 0.0
    %822 = vmatmul.mubr.f32.gmra.mrb[0].mxu0 %v541
    %v823 = vpop.f32.mrb[0].mxu0
    %v824 = vadd.f32 0.0, %v823
    %v825 = vpop.f32.mrb[0].mxu0
    %826 = vmatprep.mubr.f32.mxu0 0.0
    %827 = vmatmul.mubr.f32.gmra.mrb[0].mxu0 %v542
    %v828 = vpop.f32.mrb[0].mxu0
    %v829 = vadd.f32 0.0, %v828
    %v830 = vpop.f32.mrb[0].mxu0
    %831 = vmatprep.mubr.f32.mxu0 0.0
    %832 = vmatmul.mubr.f32.gmra.mrb[0].mxu0 %v543
    %v833 = vpop.f32.mrb[0].mxu0
    %v834 = vadd.f32 0.0, %v833
    %v835 = vpop.f32.mrb[0].mxu0
    %836 = vmatprep.mubr.f32.mxu0 0.0
    %837 = vmatmul.mubr.f32.gmra.mrb[0].mxu0 %v544
    %v838 = vpop.f32.mrb[0].mxu0
    %v839 = vadd.f32 0.0, %v838
    %v840 = vpop.f32.mrb[0].mxu0
    %841 = vmatprep.mubr.f32.mxu0 0.0
    %842 = vmatmul.mubr.f32.gmra.mrb[0].mxu0 %v545
    %v843 = vpop.f32.mrb[0].mxu0
    %v844 = vadd.f32 0.0, %v843
    %v845 = vpop.f32.mrb[0].mxu0
    %846 = vmatprep.mubr.f32.mxu0 0.0
    %847 = vmatmul.mubr.f32.gmra.mrb[0].mxu0 %v546
    %v848 = vpop.f32.mrb[0].mxu0
    %v849 = vadd.f32 0.0, %v848
    %v850 = vpop.f32.mrb[0].mxu0
    %851 = vmatprep.mubr.f32.mxu0 0.0
    %852 = vmatmul.mubr.f32.gmra.mrb[0].mxu0 %v547
    %v853 = vpop.f32.mrb[0].mxu0
    %v854 = vadd.f32 0.0, %v853
    %v855 = vpop.f32.mrb[0].mxu0
    %856 = vmatprep.mubr.f32.mxu0 0.0
    %857 = vmatmul.mubr.f32.gmra.mrb[0].mxu0 %v548
    %v858 = vpop.f32.mrb[0].mxu0
    %v859 = vadd.f32 0.0, %v858
    %v860 = vpop.f32.mrb[0].mxu0
    %861 = vmatprep.mubr.f32.mxu0 0.0
    %862 = vmatmul.mubr.f32.gmra.mrb[0].mxu0 %v549
    %v863 = vpop.f32.mrb[0].mxu0
    %v864 = vadd.f32 0.0, %v863
    %v865 = vpop.f32.mrb[0].mxu0
    %866 = vmatprep.mubr.f32.mxu0 0.0
    %867 = vmatmul.mubr.f32.gmra.mrb[0].mxu0 %v550
    %v868 = vpop.f32.mrb[0].mxu0
    %v869 = vadd.f32 0.0, %v868
    %v870 = vpop.f32.mrb[0].mxu0
    %871 = vmatprep.mubr.f32.mxu0 0.0
    %872 = vmatmul.mubr.f32.gmra.mrb[0].mxu0 %v551
    %v873 = vpop.f32.mrb[0].mxu0
    %v874 = vadd.f32 0.0, %v873
    %v875 = vpop.f32.mrb[0].mxu0
    %876 = vmatprep.mubr.f32.mxu0 0.0
    %877 = vmatmul.mubr.f32.gmra.mrb[0].mxu0 %v552
    %v878 = vpop.f32.mrb[0].mxu0
    %v879 = vadd.f32 0.0, %v878
    %v880 = vpop.f32.mrb[0].mxu0
    %881 = vmatprep.mubr.f32.mxu0 0.0
    %882 = vmatmul.mubr.f32.gmra.mrb[0].mxu0 %v553
    %v883 = vpop.f32.mrb[0].mxu0
    %v884 = vadd.f32 0.0, %v883
    %v885 = vpop.f32.mrb[0].mxu0
    %886 = vmatprep.mubr.f32.mxu0 0.0
    %887 = vmatmul.mubr.f32.gmra.mrb[0].mxu0 %v554
    %v888 = vpop.f32.mrb[0].mxu0
    %v889 = vadd.f32 0.0, %v888
    %v890 = vpop.f32.mrb[0].mxu0
    %891 = vmatprep.mubr.f32.mxu0 0.0
    %892 = vmatmul.mubr.f32.gmra.mrb[0].mxu0 %v555
    %v893 = vpop.f32.mrb[0].mxu0
    %v894 = vadd.f32 0.0, %v893
    %v895 = vpop.f32.mrb[0].mxu0
    %896 = vmatprep.mubr.f32.mxu0 0.0
    %897 = vmatmul.mubr.f32.gmra.mrb[0].mxu0 %v556
    %v898 = vpop.f32.mrb[0].mxu0
    %v899 = vadd.f32 0.0, %v898
    %v900 = vpop.f32.mrb[0].mxu0
    %901 = vmatprep.mubr.f32.mxu0 0.0
    %902 = vmatmul.mubr.f32.gmra.mrb[0].mxu0 %v557
    %v903 = vpop.f32.mrb[0].mxu0
    %v904 = vadd.f32 0.0, %v903
    %v905 = vpop.f32.mrb[0].mxu0
    %906 = vmatprep.mubr.f32.mxu0 0.0
    %907 = vmatmul.mubr.f32.gmra.mrb[0].mxu0 %v558
    %v908 = vpop.f32.mrb[0].mxu0
    %v909 = vadd.f32 0.0, %v908
    %v910 = vpop.f32.mrb[0].mxu0
    %911 = vmatprep.mubr.f32.mxu0 0.0
    %912 = vmatmul.mubr.f32.gmra.mrb[0].mxu0 %v559
    %v913 = vpop.f32.mrb[0].mxu0
    %v914 = vadd.f32 0.0, %v913
    %v915 = vpop.f32.mrb[0].mxu0
    %916 = vmatprep.mubr.f32.mxu0 0.0
    %917 = vmatmul.mubr.f32.gmra.mrb[0].mxu0 %v560
    %v918 = vpop.f32.mrb[0].mxu0
    %v919 = vadd.f32 0.0, %v918
    %v920 = vpop.f32.mrb[0].mxu0
    %921 = vmatprep.mubr.f32.mxu0 0.0
    %922 = vmatmul.mubr.f32.gmra.mrb[0].mxu0 %v561
    %v923 = vpop.f32.mrb[0].mxu0
    %v924 = vadd.f32 0.0, %v923
    %v925 = vpop.f32.mrb[0].mxu0
    %926 = vmatprep.mubr.f32.mxu0 0.0
    %927 = vmatmul.mubr.f32.gmra.mrb[0].mxu0 %v562
    %v928 = vpop.f32.mrb[0].mxu0
    %v929 = vadd.f32 0.0, %v928
    %v930 = vpop.f32.mrb[0].mxu0
    %931 = vmatprep.mubr.f32.mxu0 0.0
    %932 = vmatmul.mubr.f32.gmra.mrb[0].mxu0 %v563
    %v933 = vpop.f32.mrb[0].mxu0
    %v934 = vadd.f32 0.0, %v933
    %v935 = vpop.f32.mrb[0].mxu0
    %936 = vmatprep.mubr.f32.mxu0 0.0
    %937 = vmatmul.mubr.f32.gmra.mrb[0].mxu0 %v564
    %v938 = vpop.f32.mrb[0].mxu0
    %v939 = vadd.f32 0.0, %v938
    %v940 = vpop.f32.mrb[0].mxu0
    %941 = vmatprep.mubr.f32.mxu0 0.0
    %942 = vmatmul.mubr.f32.gmra.mrb[0].mxu0 %v565
    %v943 = vpop.f32.mrb[0].mxu0
    %v944 = vadd.f32 0.0, %v943
    %v945 = vpop.f32.mrb[0].mxu0
    %946 = vmatprep.mubr.f32.mxu0 0.0
    %947 = vmatmul.mubr.f32.gmra.mrb[0].mxu0 %v566
    %v948 = vpop.f32.mrb[0].mxu0
    %v949 = vadd.f32 0.0, %v948
    %v950 = vpop.f32.mrb[0].mxu0
    %951 = vmatprep.mubr.f32.mxu0 0.0
    %952 = vmatmul.mubr.f32.gmra.mrb[0].mxu0 %v567
    %v953 = vpop.f32.mrb[0].mxu0
    %v954 = vadd.f32 0.0, %v953
    %v955 = vpop.f32.mrb[0].mxu0
    %956 = vmatprep.mubr.f32.mxu0 0.0
    %957 = vmatmul.mubr.f32.gmra.mrb[0].mxu0 %v568
    %v958 = vpop.f32.mrb[0].mxu0
    %v959 = vadd.f32 0.0, %v958
    %v960 = vpop.f32.mrb[0].mxu0
    %961 = vmatprep.mubr.f32.mxu0 0.0
    %962 = vmatmul.mubr.f32.gmra.mrb[0].mxu0 %v569
    %v963 = vpop.f32.mrb[0].mxu0
    %v964 = vadd.f32 0.0, %v963
    %v965 = vpop.f32.mrb[0].mxu0
    %966 = vmatprep.mubr.f32.mxu0 0.0
    %967 = vmatmul.mubr.f32.gmra.mrb[0].mxu0 %v570
    %v968 = vpop.f32.mrb[0].mxu0
    %v969 = vadd.f32 0.0, %v968
    %v970 = vpop.f32.mrb[0].mxu0
    %971 = vdwg.mxu0
    %972 = vmatprep.subr.mxu0 0.0
    %973 = vmatpush1.msra.mxu0 %v654
    %974 = vmatprep.subr.mxu0 0.0
    %975 = vmatpush1.msra.mxu0 %v659
    %976 = vmatprep.subr.mxu0 0.0
    %977 = vmatpush1.msra.mxu0 %v664
    %978 = vmatprep.subr.mxu0 0.0
    %979 = vmatpush1.msra.mxu0 %v669
    %980 = vmatprep.subr.mxu0 0.0
    %981 = vmatpush1.msra.mxu0 %v674
    %982 = vmatprep.subr.mxu0 0.0
    %983 = vmatpush1.msra.mxu0 %v679
    %984 = vmatprep.subr.mxu0 0.0
    %985 = vmatpush1.msra.mxu0 %v684
    %986 = vmatprep.subr.mxu0 0.0
    %987 = vmatpush1.msra.mxu0 %v689
    %988 = vmatprep.subr.mxu0 0.0
    %989 = vmatpush1.msra.mxu0 %v694
    %990 = vmatprep.subr.mxu0 0.0
    %991 = vmatpush1.msra.mxu0 %v699
    %992 = vmatprep.subr.mxu0 0.0
    %993 = vmatpush1.msra.mxu0 %v704
    %994 = vmatprep.subr.mxu0 0.0
    %995 = vmatpush1.msra.mxu0 %v709
    %996 = vmatprep.subr.mxu0 0.0
    %997 = vmatpush1.msra.mxu0 %v714
    %998 = vmatprep.subr.mxu0 0.0
    %999 = vmatpush1.msra.mxu0 %v719
    %1000 = vmatprep.subr.mxu0 0.0
    %1001 = vmatpush1.msra.mxu0 %v724
    %1002 = vmatprep.subr.mxu0 0.0
    %1003 = vmatpush1.msra.mxu0 %v729
    %1004 = vmatprep.subr.mxu0 0.0
    %1005 = vmatpush1.msra.mxu0 0.0
    %1006 = vmatprep.subr.mxu0 0.0
    %1007 = vmatpush1.msra.mxu0 0.0
    %1008 = vmatprep.subr.mxu0 0.0
    %1009 = vmatpush1.msra.mxu0 0.0
    %1010 = vmatprep.subr.mxu0 0.0
    %1011 = vmatpush1.msra.mxu0 0.0
    %1012 = vmatprep.subr.mxu0 0.0
    %1013 = vmatpush1.msra.mxu0 0.0
    %1014 = vmatprep.subr.mxu0 0.0
    %1015 = vmatpush1.msra.mxu0 0.0
    %1016 = vmatprep.subr.mxu0 0.0
    %1017 = vmatpush1.msra.mxu0 0.0
    %1018 = vmatprep.subr.mxu0 0.0
    %1019 = vmatpush1.msra.mxu0 0.0
    %1020 = vmatprep.subr.mxu0 0.0
    %1021 = vmatpush1.msra.mxu0 0.0
    %1022 = vmatprep.subr.mxu0 0.0
    %1023 = vmatpush1.msra.mxu0 0.0
    %1024 = vmatprep.subr.mxu0 0.0
    %1025 = vmatpush1.msra.mxu0 0.0
    %1026 = vmatprep.subr.mxu0 0.0
    %1027 = vmatpush1.msra.mxu0 0.0
    %1028 = vmatprep.subr.mxu0 0.0
    %1029 = vmatpush1.msra.mxu0 0.0
    %1030 = vmatprep.subr.mxu0 0.0
    %1031 = vmatpush1.msra.mxu0 0.0
    %1032 = vmatprep.subr.mxu0 0.0
    %1033 = vmatpush1.msra.mxu0 0.0
    %1034 = vmatprep.subr.mxu0 0.0
    %1035 = vmatpush1.msra.mxu0 0.0
    %1036 = vmatprep.mubr.f32.mxu0 0.0
    %1037 = vmatmul.mubr.f32.gmra.mrb[0].mxu0 %v266
    %v1038 = vpop.f32.mrb[0].mxu0
    %v1039 = vadd.f32 0.0, %v1038
    %v1040 = vpop.f32.mrb[0].mxu0
    %1041 = vmatprep.mubr.f32.mxu0 0.0
    %1042 = vmatmul.mubr.f32.gmra.mrb[0].mxu0 %v272
    %v1043 = vpop.f32.mrb[0].mxu0
    %v1044 = vadd.f32 0.0, %v1043
    %v1045 = vpop.f32.mrb[0].mxu0
    %1046 = vdwg.mxu0
    %1047 = vmatprep.subr.mxu0 0.0
    %1048 = vmatpush1.msra.mxu0 %v734
    %1049 = vmatprep.subr.mxu0 0.0
    %1050 = vmatpush1.msra.mxu0 %v739
    %1051 = vmatprep.subr.mxu0 0.0
    %1052 = vmatpush1.msra.mxu0 %v744
    %1053 = vmatprep.subr.mxu0 0.0
    %1054 = vmatpush1.msra.mxu0 %v749
    %1055 = vmatprep.subr.mxu0 0.0
    %1056 = vmatpush1.msra.mxu0 %v754
    %1057 = vmatprep.subr.mxu0 0.0
    %1058 = vmatpush1.msra.mxu0 %v759
    %1059 = vmatprep.subr.mxu0 0.0
    %1060 = vmatpush1.msra.mxu0 %v764
    %1061 = vmatprep.subr.mxu0 0.0
    %1062 = vmatpush1.msra.mxu0 %v769
    %1063 = vmatprep.subr.mxu0 0.0
    %1064 = vmatpush1.msra.mxu0 %v774
    %1065 = vmatprep.subr.mxu0 0.0
    %1066 = vmatpush1.msra.mxu0 %v779
    %1067 = vmatprep.subr.mxu0 0.0
    %1068 = vmatpush1.msra.mxu0 %v784
    %1069 = vmatprep.subr.mxu0 0.0
    %1070 = vmatpush1.msra.mxu0 %v789
    %1071 = vmatprep.subr.mxu0 0.0
    %1072 = vmatpush1.msra.mxu0 %v794
    %1073 = vmatprep.subr.mxu0 0.0
    %1074 = vmatpush1.msra.mxu0 %v799
    %1075 = vmatprep.subr.mxu0 0.0
    %1076 = vmatpush1.msra.mxu0 %v804
    %1077 = vmatprep.subr.mxu0 0.0
    %1078 = vmatpush1.msra.mxu0 %v809
    %1079 = vmatprep.subr.mxu0 0.0
    %1080 = vmatpush1.msra.mxu0 0.0
    %1081 = vmatprep.subr.mxu0 0.0
    %1082 = vmatpush1.msra.mxu0 0.0
    %1083 = vmatprep.subr.mxu0 0.0
    %1084 = vmatpush1.msra.mxu0 0.0
    %1085 = vmatprep.subr.mxu0 0.0
    %1086 = vmatpush1.msra.mxu0 0.0
    %1087 = vmatprep.subr.mxu0 0.0
    %1088 = vmatpush1.msra.mxu0 0.0
    %1089 = vmatprep.subr.mxu0 0.0
    %1090 = vmatpush1.msra.mxu0 0.0
    %1091 = vmatprep.subr.mxu0 0.0
    %1092 = vmatpush1.msra.mxu0 0.0
    %1093 = vmatprep.subr.mxu0 0.0
    %1094 = vmatpush1.msra.mxu0 0.0
    %1095 = vmatprep.subr.mxu0 0.0
    %1096 = vmatpush1.msra.mxu0 0.0
    %1097 = vmatprep.subr.mxu0 0.0
    %1098 = vmatpush1.msra.mxu0 0.0
    %1099 = vmatprep.subr.mxu0 0.0
    %1100 = vmatpush1.msra.mxu0 0.0
    %1101 = vmatprep.subr.mxu0 0.0
    %1102 = vmatpush1.msra.mxu0 0.0
    %1103 = vmatprep.subr.mxu0 0.0
    %1104 = vmatpush1.msra.mxu0 0.0
    %1105 = vmatprep.subr.mxu0 0.0
    %1106 = vmatpush1.msra.mxu0 0.0
    %1107 = vmatprep.subr.mxu0 0.0
    %1108 = vmatpush1.msra.mxu0 0.0
    %1109 = vmatprep.subr.mxu0 0.0
    %1110 = vmatpush1.msra.mxu0 0.0
    %1111 = vmatprep.mubr.f32.mxu0 0.0
    %1112 = vmatmul.mubr.f32.gmra.mrb[0].mxu0 %v268
    %v1113 = vpop.f32.mrb[0].mxu0
    %v1114 = vadd.f32 0.0, %v1113
    %v1115 = vpop.f32.mrb[0].mxu0
    %1116 = vmatprep.mubr.f32.mxu0 0.0
    %1117 = vmatmul.mubr.f32.gmra.mrb[0].mxu0 %v274
    %v1118 = vpop.f32.mrb[0].mxu0
    %v1119 = vadd.f32 0.0, %v1118
    %v1120 = vpop.f32.mrb[0].mxu0
    %1121 = vdwg.mxu0
    %1122 = vmatprep.subr.mxu0 0.0
    %1123 = vmatpush1.msra.mxu0 %v814
    %1124 = vmatprep.subr.mxu0 0.0
    %1125 = vmatpush1.msra.mxu0 %v819
    %1126 = vmatprep.subr.mxu0 0.0
    %1127 = vmatpush1.msra.mxu0 %v824
    %1128 = vmatprep.subr.mxu0 0.0
    %1129 = vmatpush1.msra.mxu0 %v829
    %1130 = vmatprep.subr.mxu0 0.0
    %1131 = vmatpush1.msra.mxu0 %v834
    %1132 = vmatprep.subr.mxu0 0.0
    %1133 = vmatpush1.msra.mxu0 %v839
    %1134 = vmatprep.subr.mxu0 0.0
    %1135 = vmatpush1.msra.mxu0 %v844
    %1136 = vmatprep.subr.mxu0 0.0
    %1137 = vmatpush1.msra.mxu0 %v849
    %1138 = vmatprep.subr.mxu0 0.0
    %1139 = vmatpush1.msra.mxu0 %v854
    %1140 = vmatprep.subr.mxu0 0.0
    %1141 = vmatpush1.msra.mxu0 %v859
    %1142 = vmatprep.subr.mxu0 0.0
    %1143 = vmatpush1.msra.mxu0 %v864
    %1144 = vmatprep.subr.mxu0 0.0
    %1145 = vmatpush1.msra.mxu0 %v869
    %1146 = vmatprep.subr.mxu0 0.0
    %1147 = vmatpush1.msra.mxu0 %v874
    %1148 = vmatprep.subr.mxu0 0.0
    %1149 = vmatpush1.msra.mxu0 %v879
    %1150 = vmatprep.subr.mxu0 0.0
    %1151 = vmatpush1.msra.mxu0 %v884
    %1152 = vmatprep.subr.mxu0 0.0
    %1153 = vmatpush1.msra.mxu0 %v889
    %1154 = vmatprep.subr.mxu0 0.0
    %1155 = vmatpush1.msra.mxu0 0.0
    %1156 = vmatprep.subr.mxu0 0.0
    %1157 = vmatpush1.msra.mxu0 0.0
    %1158 = vmatprep.subr.mxu0 0.0
    %1159 = vmatpush1.msra.mxu0 0.0
    %1160 = vmatprep.subr.mxu0 0.0
    %1161 = vmatpush1.msra.mxu0 0.0
    %1162 = vmatprep.subr.mxu0 0.0
    %1163 = vmatpush1.msra.mxu0 0.0
    %1164 = vmatprep.subr.mxu0 0.0
    %1165 = vmatpush1.msra.mxu0 0.0
    %1166 = vmatprep.subr.mxu0 0.0
    %1167 = vmatpush1.msra.mxu0 0.0
    %1168 = vmatprep.subr.mxu0 0.0
    %1169 = vmatpush1.msra.mxu0 0.0
    %1170 = vmatprep.subr.mxu0 0.0
    %1171 = vmatpush1.msra.mxu0 0.0
    %1172 = vmatprep.subr.mxu0 0.0
    %1173 = vmatpush1.msra.mxu0 0.0
    %1174 = vmatprep.subr.mxu0 0.0
    %1175 = vmatpush1.msra.mxu0 0.0
    %1176 = vmatprep.subr.mxu0 0.0
    %1177 = vmatpush1.msra.mxu0 0.0
    %1178 = vmatprep.subr.mxu0 0.0
    %1179 = vmatpush1.msra.mxu0 0.0
    %1180 = vmatprep.subr.mxu0 0.0
    %1181 = vmatpush1.msra.mxu0 0.0
    %1182 = vmatprep.subr.mxu0 0.0
    %1183 = vmatpush1.msra.mxu0 0.0
    %1184 = vmatprep.subr.mxu0 0.0
    %1185 = vmatpush1.msra.mxu0 0.0
    %1186 = vmatprep.mubr.f32.mxu0 0.0
    %1187 = vmatmul.mubr.f32.gmra.mrb[0].mxu0 %v343
    %v1188 = vpop.f32.mrb[0].mxu0
    %v1189 = vadd.f32 0.0, %v1188
    %v1190 = vpop.f32.mrb[0].mxu0
    %1191 = vmatprep.mubr.f32.mxu0 0.0
    %1192 = vmatmul.mubr.f32.gmra.mrb[0].mxu0 %v349
    %v1193 = vpop.f32.mrb[0].mxu0
    %v1194 = vadd.f32 0.0, %v1193
    %v1195 = vpop.f32.mrb[0].mxu0
    %1196 = vdwg.mxu0
    %1197 = vmatprep.subr.mxu0 0.0
    %1198 = vmatpush1.msra.mxu0 %v894
    %1199 = vmatprep.subr.mxu0 0.0
    %1200 = vmatpush1.msra.mxu0 %v899
    %1201 = vmatprep.subr.mxu0 0.0
    %1202 = vmatpush1.msra.mxu0 %v904
    %1203 = vmatprep.subr.mxu0 0.0
    %1204 = vmatpush1.msra.mxu0 %v909
    %1205 = vmatprep.subr.mxu0 0.0
    %1206 = vmatpush1.msra.mxu0 %v914
    %1207 = vmatprep.subr.mxu0 0.0
    %1208 = vmatpush1.msra.mxu0 %v919
    %1209 = vmatprep.subr.mxu0 0.0
    %1210 = vmatpush1.msra.mxu0 %v924
    %1211 = vmatprep.subr.mxu0 0.0
    %1212 = vmatpush1.msra.mxu0 %v929
    %1213 = vmatprep.subr.mxu0 0.0
    %1214 = vmatpush1.msra.mxu0 %v934
    %1215 = vmatprep.subr.mxu0 0.0
    %1216 = vmatpush1.msra.mxu0 %v939
    %1217 = vmatprep.subr.mxu0 0.0
    %1218 = vmatpush1.msra.mxu0 %v944
    %1219 = vmatprep.subr.mxu0 0.0
    %1220 = vmatpush1.msra.mxu0 %v949
    %1221 = vmatprep.subr.mxu0 0.0
    %1222 = vmatpush1.msra.mxu0 %v954
    %1223 = vmatprep.subr.mxu0 0.0
    %1224 = vmatpush1.msra.mxu0 %v959
    %1225 = vmatprep.subr.mxu0 0.0
    %1226 = vmatpush1.msra.mxu0 %v964
    %1227 = vmatprep.subr.mxu0 0.0
    %1228 = vmatpush1.msra.mxu0 %v969
    %1229 = vmatprep.subr.mxu0 0.0
    %1230 = vmatpush1.msra.mxu0 0.0
    %1231 = vmatprep.subr.mxu0 0.0
    %1232 = vmatpush1.msra.mxu0 0.0
    %1233 = vmatprep.subr.mxu0 0.0
    %1234 = vmatpush1.msra.mxu0 0.0
    %1235 = vmatprep.subr.mxu0 0.0
    %1236 = vmatpush1.msra.mxu0 0.0
    %1237 = vmatprep.subr.mxu0 0.0
    %1238 = vmatpush1.msra.mxu0 0.0
    %1239 = vmatprep.subr.mxu0 0.0
    %1240 = vmatpush1.msra.mxu0 0.0
    %1241 = vmatprep.subr.mxu0 0.0
    %1242 = vmatpush1.msra.mxu0 0.0
    %1243 = vmatprep.subr.mxu0 0.0
    %1244 = vmatpush1.msra.mxu0 0.0
    %1245 = vmatprep.subr.mxu0 0.0
    %1246 = vmatpush1.msra.mxu0 0.0
    %1247 = vmatprep.subr.mxu0 0.0
    %1248 = vmatpush1.msra.mxu0 0.0
    %1249 = vmatprep.subr.mxu0 0.0
    %1250 = vmatpush1.msra.mxu0 0.0
    %1251 = vmatprep.subr.mxu0 0.0
    %1252 = vmatpush1.msra.mxu0 0.0
    %1253 = vmatprep.subr.mxu0 0.0
    %1254 = vmatpush1.msra.mxu0 0.0
    %1255 = vmatprep.subr.mxu0 0.0
    %1256 = vmatpush1.msra.mxu0 0.0
    %1257 = vmatprep.subr.mxu0 0.0
    %1258 = vmatpush1.msra.mxu0 0.0
    %1259 = vmatprep.subr.mxu0 0.0
    %1260 = vmatpush1.msra.mxu0 0.0
    %1261 = vmatprep.mubr.f32.mxu0 0.0
    %1262 = vmatmul.mubr.f32.gmra.mrb[0].mxu0 %v345
    %v1263 = vpop.f32.mrb[0].mxu0
    %v1264 = vadd.f32 0.0, %v1263
    %v1265 = vpop.f32.mrb[0].mxu0
    %1266 = vmatprep.mubr.f32.mxu0 0.0
    %1267 = vmatmul.mubr.f32.gmra.mrb[0].mxu0 %v351
    %v1268 = vpop.f32.mrb[0].mxu0
    %v1269 = vadd.f32 0.0, %v1268
    %v1270 = vpop.f32.mrb[0].mxu0
    %1271 = vdwg.mxu0
    %v1272 = vld [vmem:[%s6] sm:$0xff]
    %v1273 = vld [vmem:[%s6 + $0x8] sm:$0xff]
    %v1274 = vld [vmem:[%s6 + $0x10] sm:$0xff]
    %v1275 = vld [vmem:[%s6 + $0x18] sm:$0xff]
    %v1276 = vld [vmem:[%s6 + $0x20] sm:$0xff]
    %v1277 = vld [vmem:[%s6 + $0x28] sm:$0xff]
    %v1278 = vld [vmem:[%s6 + $0x30] sm:$0xff]
    %v1279 = vld [vmem:[%s6 + $0x38] sm:$0xff]
    %v1280 = vadd.f32 %v1039, %v1272
    %v1281 = vadd.f32 %v1044, %v1273
    %v1282 = vadd.f32 %v1114, %v1274
    %v1283 = vadd.f32 %v1119, %v1275
    %v1284 = vadd.f32 %v1189, %v1276
    %v1285 = vadd.f32 %v1194, %v1277
    %v1286 = vadd.f32 %v1264, %v1278
    %v1287 = vadd.f32 %v1269, %v1279
    %vm1288 = vcmask 130048
    %v1289 = vsel %vm1288, %v1280, -inf
    %1290 = vmax.xlane.f32.xlu0 %v1289
    %v1291 = vpop.xlane.xlu0 %1290
    %v1292 = vsel %vm1288, %v1281, -inf
    %1293 = vmax.xlane.f32.xlu0 %v1292
    %v1294 = vpop.xlane.xlu0 %1293
    %v1295 = vsel %vm1288, %v1282, -inf
    %1296 = vmax.xlane.f32.xlu0 %v1295
    %v1297 = vpop.xlane.xlu0 %1296
    %v1298 = vsel %vm1288, %v1283, -inf
    %1299 = vmax.xlane.f32.xlu0 %v1298
    %v1300 = vpop.xlane.xlu0 %1299
    %v1301 = vsel %vm1288, %v1284, -inf
    %1302 = vmax.xlane.f32.xlu0 %v1301
    %v1303 = vpop.xlane.xlu0 %1302
    %v1304 = vsel %vm1288, %v1285, -inf
    %1305 = vmax.xlane.f32.xlu0 %v1304
    %v1306 = vpop.xlane.xlu0 %1305
    %v1307 = vsel %vm1288, %v1286, -inf
    %1308 = vmax.xlane.f32.xlu0 %v1307
    %v1309 = vpop.xlane.xlu0 %1308
    %v1310 = vsel %vm1288, %v1287, -inf
    %1311 = vmax.xlane.f32.xlu0 %v1310
    %v1312 = vpop.xlane.xlu0 %1311
    %v1313 = vsub.f32 %v1280, %v1291
    %v1314 = vsub.f32 %v1281, %v1294
    %v1315 = vsub.f32 %v1282, %v1297
    %v1316 = vsub.f32 %v1283, %v1300
    %v1317 = vsub.f32 %v1284, %v1303
    %v1318 = vsub.f32 %v1285, %v1306
    %v1319 = vsub.f32 %v1286, %v1309
    %v1320 = vsub.f32 %v1287, %v1312
    %v1321 = vmul.f32 %v1313, 1.442695
    %v1322 = vpow.pop %v1321
    %v1323 = vmul.f32 %v1314, 1.442695
    %v1324 = vpow.pop %v1323
    %v1325 = vmul.f32 %v1315, 1.442695
    %v1326 = vpow.pop %v1325
    %v1327 = vmul.f32 %v1316, 1.442695
    %v1328 = vpow.pop %v1327
    %v1329 = vmul.f32 %v1317, 1.442695
    %v1330 = vpow.pop %v1329
    %v1331 = vmul.f32 %v1318, 1.442695
    %v1332 = vpow.pop %v1331
    %v1333 = vmul.f32 %v1319, 1.442695
    %v1334 = vpow.pop %v1333
    %v1335 = vmul.f32 %v1320, 1.442695
    %v1336 = vpow.pop %v1335
    %v1337 = vsel %vm1288, %v1322, 0.0
    %1338 = vadd.xlane.f32.xlu0 %v1337
    %v1339 = vpop.xlane.xlu0 %1338
    %v1340 = vsel %vm1288, %v1324, 0.0
    %1341 = vadd.xlane.f32.xlu0 %v1340
    %v1342 = vpop.xlane.xlu0 %1341
    %v1343 = vsel %vm1288, %v1326, 0.0
    %1344 = vadd.xlane.f32.xlu0 %v1343
    %v1345 = vpop.xlane.xlu0 %1344
    %v1346 = vsel %vm1288, %v1328, 0.0
    %1347 = vadd.xlane.f32.xlu0 %v1346
    %v1348 = vpop.xlane.xlu0 %1347
    %v1349 = vsel %vm1288, %v1330, 0.0
    %1350 = vadd.xlane.f32.xlu0 %v1349
    %v1351 = vpop.xlane.xlu0 %1350
    %v1352 = vsel %vm1288, %v1332, 0.0
    %1353 = vadd.xlane.f32.xlu0 %v1352
    %v1354 = vpop.xlane.xlu0 %1353
    %v1355 = vsel %vm1288, %v1334, 0.0
    %1356 = vadd.xlane.f32.xlu0 %v1355
    %v1357 = vpop.xlane.xlu0 %1356
    %v1358 = vsel %vm1288, %v1336, 0.0
    %1359 = vadd.xlane.f32.xlu0 %v1358
    %v1360 = vpop.xlane.xlu0 %1359
    %v1361 = vrcp.pop %v1339
    %v1362 = vrcp.pop %v1342
    %v1363 = vrcp.pop %v1345
    %v1364 = vrcp.pop %v1348
    %v1365 = vrcp.pop %v1351
    %v1366 = vrcp.pop %v1354
    %v1367 = vrcp.pop %v1357
    %v1368 = vrcp.pop %v1360
    %v1369 = vmul.f32 %v1322, %v1361
    %v1370 = vmul.f32 %v1324, %v1362
    %v1371 = vmul.f32 %v1326, %v1363
    %v1372 = vmul.f32 %v1328, %v1364
    %v1373 = vmul.f32 %v1330, %v1365
    %v1374 = vmul.f32 %v1332, %v1366
    %v1375 = vmul.f32 %v1334, %v1367
    %v1376 = vmul.f32 %v1336, %v1368
    %v1378 = vsel %vm1288, %v1369, 0
    %v1381 = vsel %vm1288, %v1370, 0
    %1383 = vmatprep.subr.mxu0 0.0
    %1384 = vmatpush1.msra.mxu0 %v420
    %1385 = vmatprep.subr.mxu0 0.0
    %1386 = vmatpush1.msra.mxu0 %v426
    %1387 = vmatprep.subr.mxu0 0.0
    %1388 = vmatpush1.msra.mxu0 0.0
    %1389 = vmatprep.subr.mxu0 0.0
    %1390 = vmatpush1.msra.mxu0 0.0
    %1391 = vmatprep.subr.mxu0 0.0
    %1392 = vmatpush1.msra.mxu0 0.0
    %1393 = vmatprep.subr.mxu0 0.0
    %1394 = vmatpush1.msra.mxu0 0.0
    %1395 = vmatprep.subr.mxu0 0.0
    %1396 = vmatpush1.msra.mxu0 0.0
    %1397 = vmatprep.subr.mxu0 0.0
    %1398 = vmatpush1.msra.mxu0 0.0
    %1399 = vmatprep.subr.mxu0 0.0
    %1400 = vmatpush1.msra.mxu0 0.0
    %1401 = vmatprep.subr.mxu0 0.0
    %1402 = vmatpush1.msra.mxu0 0.0
    %1403 = vmatprep.subr.mxu0 0.0
    %1404 = vmatpush1.msra.mxu0 0.0
    %1405 = vmatprep.subr.mxu0 0.0
    %1406 = vmatpush1.msra.mxu0 0.0
    %1407 = vmatprep.subr.mxu0 0.0
    %1408 = vmatpush1.msra.mxu0 0.0
    %1409 = vmatprep.subr.mxu0 0.0
    %1410 = vmatpush1.msra.mxu0 0.0
    %1411 = vmatprep.subr.mxu0 0.0
    %1412 = vmatpush1.msra.mxu0 0.0
    %1413 = vmatprep.subr.mxu0 0.0
    %1414 = vmatpush1.msra.mxu0 0.0
    %1415 = vmatprep.subr.mxu0 0.0
    %1416 = vmatpush1.msra.mxu0 0.0
    %1417 = vmatprep.subr.mxu0 0.0
    %1418 = vmatpush1.msra.mxu0 0.0
    %1419 = vmatprep.subr.mxu0 0.0
    %1420 = vmatpush1.msra.mxu0 0.0
    %1421 = vmatprep.subr.mxu0 0.0
    %1422 = vmatpush1.msra.mxu0 0.0
    %1423 = vmatprep.subr.mxu0 0.0
    %1424 = vmatpush1.msra.mxu0 0.0
    %1425 = vmatprep.subr.mxu0 0.0
    %1426 = vmatpush1.msra.mxu0 0.0
    %1427 = vmatprep.subr.mxu0 0.0
    %1428 = vmatpush1.msra.mxu0 0.0
    %1429 = vmatprep.subr.mxu0 0.0
    %1430 = vmatpush1.msra.mxu0 0.0
    %1431 = vmatprep.subr.mxu0 0.0
    %1432 = vmatpush1.msra.mxu0 0.0
    %1433 = vmatprep.subr.mxu0 0.0
    %1434 = vmatpush1.msra.mxu0 0.0
    %1435 = vmatprep.subr.mxu0 0.0
    %1436 = vmatpush1.msra.mxu0 0.0
    %1437 = vmatprep.subr.mxu0 0.0
    %1438 = vmatpush1.msra.mxu0 0.0
    %1439 = vmatprep.subr.mxu0 0.0
    %1440 = vmatpush1.msra.mxu0 0.0
    %1441 = vmatprep.subr.mxu0 0.0
    %1442 = vmatpush1.msra.mxu0 0.0
    %1443 = vmatprep.subr.mxu0 0.0
    %1444 = vmatpush1.msra.mxu0 0.0
    %1445 = vmatprep.subr.mxu0 0.0
    %1446 = vmatpush1.msra.mxu0 0.0
    %1447 = vmatprep.mubr.f32.mxu0 0.0
    %1448 = vmatmul.mubr.f32.gmra.mrb[0].mxu0 %v1378
    %v1449 = vpop.f32.mrb[0].mxu0
    %v1450 = vadd.f32 0.0, %v1449
    %v1451 = vpop.f32.mrb[0].mxu0
    %1452 = vmatprep.mubr.f32.mxu0 0.0
    %1453 = vmatmul.mubr.f32.gmra.mrb[0].mxu0 %v1381
    %v1454 = vpop.f32.mrb[0].mxu0
    %v1455 = vadd.f32 0.0, %v1454
    %v1456 = vpop.f32.mrb[0].mxu0
    %1457 = vdwg.mxu0
    %v1459 = vsel %vm1288, %v1371, 0
    %v1462 = vsel %vm1288, %v1372, 0
    %1464 = vmatprep.subr.mxu0 0.0
    %1465 = vmatpush1.msra.mxu0 %v422
    %1466 = vmatprep.subr.mxu0 0.0
    %1467 = vmatpush1.msra.mxu0 %v428
    %1468 = vmatprep.subr.mxu0 0.0
    %1469 = vmatpush1.msra.mxu0 0.0
    %1470 = vmatprep.subr.mxu0 0.0
    %1471 = vmatpush1.msra.mxu0 0.0
    %1472 = vmatprep.subr.mxu0 0.0
    %1473 = vmatpush1.msra.mxu0 0.0
    %1474 = vmatprep.subr.mxu0 0.0
    %1475 = vmatpush1.msra.mxu0 0.0
    %1476 = vmatprep.subr.mxu0 0.0
    %1477 = vmatpush1.msra.mxu0 0.0
    %1478 = vmatprep.subr.mxu0 0.0
    %1479 = vmatpush1.msra.mxu0 0.0
    %1480 = vmatprep.subr.mxu0 0.0
    %1481 = vmatpush1.msra.mxu0 0.0
    %1482 = vmatprep.subr.mxu0 0.0
    %1483 = vmatpush1.msra.mxu0 0.0
    %1484 = vmatprep.subr.mxu0 0.0
    %1485 = vmatpush1.msra.mxu0 0.0
    %1486 = vmatprep.subr.mxu0 0.0
    %1487 = vmatpush1.msra.mxu0 0.0
    %1488 = vmatprep.subr.mxu0 0.0
    %1489 = vmatpush1.msra.mxu0 0.0
    %1490 = vmatprep.subr.mxu0 0.0
    %1491 = vmatpush1.msra.mxu0 0.0
    %1492 = vmatprep.subr.mxu0 0.0
    %1493 = vmatpush1.msra.mxu0 0.0
    %1494 = vmatprep.subr.mxu0 0.0
    %1495 = vmatpush1.msra.mxu0 0.0
    %1496 = vmatprep.subr.mxu0 0.0
    %1497 = vmatpush1.msra.mxu0 0.0
    %1498 = vmatprep.subr.mxu0 0.0
    %1499 = vmatpush1.msra.mxu0 0.0
    %1500 = vmatprep.subr.mxu0 0.0
    %1501 = vmatpush1.msra.mxu0 0.0
    %1502 = vmatprep.subr.mxu0 0.0
    %1503 = vmatpush1.msra.mxu0 0.0
    %1504 = vmatprep.subr.mxu0 0.0
    %1505 = vmatpush1.msra.mxu0 0.0
    %1506 = vmatprep.subr.mxu0 0.0
    %1507 = vmatpush1.msra.mxu0 0.0
    %1508 = vmatprep.subr.mxu0 0.0
    %1509 = vmatpush1.msra.mxu0 0.0
    %1510 = vmatprep.subr.mxu0 0.0
    %1511 = vmatpush1.msra.mxu0 0.0
    %1512 = vmatprep.subr.mxu0 0.0
    %1513 = vmatpush1.msra.mxu0 0.0
    %1514 = vmatprep.subr.mxu0 0.0
    %1515 = vmatpush1.msra.mxu0 0.0
    %1516 = vmatprep.subr.mxu0 0.0
    %1517 = vmatpush1.msra.mxu0 0.0
    %1518 = vmatprep.subr.mxu0 0.0
    %1519 = vmatpush1.msra.mxu0 0.0
    %1520 = vmatprep.subr.mxu0 0.0
    %1521 = vmatpush1.msra.mxu0 0.0
    %1522 = vmatprep.subr.mxu0 0.0
    %1523 = vmatpush1.msra.mxu0 0.0
    %1524 = vmatprep.subr.mxu0 0.0
    %1525 = vmatpush1.msra.mxu0 0.0
    %1526 = vmatprep.subr.mxu0 0.0
    %1527 = vmatpush1.msra.mxu0 0.0
    %1528 = vmatprep.mubr.f32.mxu0 0.0
    %1529 = vmatmul.mubr.f32.gmra.mrb[0].mxu0 %v1459
    %v1530 = vpop.f32.mrb[0].mxu0
    %v1531 = vadd.f32 0.0, %v1530
    %v1532 = vpop.f32.mrb[0].mxu0
    %1533 = vmatprep.mubr.f32.mxu0 0.0
    %1534 = vmatmul.mubr.f32.gmra.mrb[0].mxu0 %v1462
    %v1535 = vpop.f32.mrb[0].mxu0
    %v1536 = vadd.f32 0.0, %v1535
    %v1537 = vpop.f32.mrb[0].mxu0
    %1538 = vdwg.mxu0
    %v1540 = vsel %vm1288, %v1373, 0
    %v1543 = vsel %vm1288, %v1374, 0
    %1545 = vmatprep.subr.mxu0 0.0
    %1546 = vmatpush1.msra.mxu0 %v497
    %1547 = vmatprep.subr.mxu0 0.0
    %1548 = vmatpush1.msra.mxu0 %v503
    %1549 = vmatprep.subr.mxu0 0.0
    %1550 = vmatpush1.msra.mxu0 0.0
    %1551 = vmatprep.subr.mxu0 0.0
    %1552 = vmatpush1.msra.mxu0 0.0
    %1553 = vmatprep.subr.mxu0 0.0
    %1554 = vmatpush1.msra.mxu0 0.0
    %1555 = vmatprep.subr.mxu0 0.0
    %1556 = vmatpush1.msra.mxu0 0.0
    %1557 = vmatprep.subr.mxu0 0.0
    %1558 = vmatpush1.msra.mxu0 0.0
    %1559 = vmatprep.subr.mxu0 0.0
    %1560 = vmatpush1.msra.mxu0 0.0
    %1561 = vmatprep.subr.mxu0 0.0
    %1562 = vmatpush1.msra.mxu0 0.0
    %1563 = vmatprep.subr.mxu0 0.0
    %1564 = vmatpush1.msra.mxu0 0.0
    %1565 = vmatprep.subr.mxu0 0.0
    %1566 = vmatpush1.msra.mxu0 0.0
    %1567 = vmatprep.subr.mxu0 0.0
    %1568 = vmatpush1.msra.mxu0 0.0
    %1569 = vmatprep.subr.mxu0 0.0
    %1570 = vmatpush1.msra.mxu0 0.0
    %1571 = vmatprep.subr.mxu0 0.0
    %1572 = vmatpush1.msra.mxu0 0.0
    %1573 = vmatprep.subr.mxu0 0.0
    %1574 = vmatpush1.msra.mxu0 0.0
    %1575 = vmatprep.subr.mxu0 0.0
    %1576 = vmatpush1.msra.mxu0 0.0
    %1577 = vmatprep.subr.mxu0 0.0
    %1578 = vmatpush1.msra.mxu0 0.0
    %1579 = vmatprep.subr.mxu0 0.0
    %1580 = vmatpush1.msra.mxu0 0.0
    %1581 = vmatprep.subr.mxu0 0.0
    %1582 = vmatpush1.msra.mxu0 0.0
    %1583 = vmatprep.subr.mxu0 0.0
    %1584 = vmatpush1.msra.mxu0 0.0
    %1585 = vmatprep.subr.mxu0 0.0
    %1586 = vmatpush1.msra.mxu0 0.0
    %1587 = vmatprep.subr.mxu0 0.0
    %1588 = vmatpush1.msra.mxu0 0.0
    %1589 = vmatprep.subr.mxu0 0.0
    %1590 = vmatpush1.msra.mxu0 0.0
    %1591 = vmatprep.subr.mxu0 0.0
    %1592 = vmatpush1.msra.mxu0 0.0
    %1593 = vmatprep.subr.mxu0 0.0
    %1594 = vmatpush1.msra.mxu0 0.0
    %1595 = vmatprep.subr.mxu0 0.0
    %1596 = vmatpush1.msra.mxu0 0.0
    %1597 = vmatprep.subr.mxu0 0.0
    %1598 = vmatpush1.msra.mxu0 0.0
    %1599 = vmatprep.subr.mxu0 0.0
    %1600 = vmatpush1.msra.mxu0 0.0
    %1601 = vmatprep.subr.mxu0 0.0
    %1602 = vmatpush1.msra.mxu0 0.0
    %1603 = vmatprep.subr.mxu0 0.0
    %1604 = vmatpush1.msra.mxu0 0.0
    %1605 = vmatprep.subr.mxu0 0.0
    %1606 = vmatpush1.msra.mxu0 0.0
    %1607 = vmatprep.subr.mxu0 0.0
    %1608 = vmatpush1.msra.mxu0 0.0
    %1609 = vmatprep.mubr.f32.mxu0 0.0
    %1610 = vmatmul.mubr.f32.gmra.mrb[0].mxu0 %v1540
    %v1611 = vpop.f32.mrb[0].mxu0
    %v1612 = vadd.f32 0.0, %v1611
    %v1613 = vpop.f32.mrb[0].mxu0
    %1614 = vmatprep.mubr.f32.mxu0 0.0
    %1615 = vmatmul.mubr.f32.gmra.mrb[0].mxu0 %v1543
    %v1616 = vpop.f32.mrb[0].mxu0
    %v1617 = vadd.f32 0.0, %v1616
    %v1618 = vpop.f32.mrb[0].mxu0
    %1619 = vdwg.mxu0
    %v1621 = vsel %vm1288, %v1375, 0
    %v1624 = vsel %vm1288, %v1376, 0
    %1626 = vmatprep.subr.mxu0 0.0
    %1627 = vmatpush1.msra.mxu0 %v499
    %1628 = vmatprep.subr.mxu0 0.0
    %1629 = vmatpush1.msra.mxu0 %v505
    %1630 = vmatprep.subr.mxu0 0.0
    %1631 = vmatpush1.msra.mxu0 0.0
    %1632 = vmatprep.subr.mxu0 0.0
    %1633 = vmatpush1.msra.mxu0 0.0
    %1634 = vmatprep.subr.mxu0 0.0
    %1635 = vmatpush1.msra.mxu0 0.0
    %1636 = vmatprep.subr.mxu0 0.0
    %1637 = vmatpush1.msra.mxu0 0.0
    %1638 = vmatprep.subr.mxu0 0.0
    %1639 = vmatpush1.msra.mxu0 0.0
    %1640 = vmatprep.subr.mxu0 0.0
    %1641 = vmatpush1.msra.mxu0 0.0
    %1642 = vmatprep.subr.mxu0 0.0
    %1643 = vmatpush1.msra.mxu0 0.0
    %1644 = vmatprep.subr.mxu0 0.0
    %1645 = vmatpush1.msra.mxu0 0.0
    %1646 = vmatprep.subr.mxu0 0.0
    %1647 = vmatpush1.msra.mxu0 0.0
    %1648 = vmatprep.subr.mxu0 0.0
    %1649 = vmatpush1.msra.mxu0 0.0
    %1650 = vmatprep.subr.mxu0 0.0
    %1651 = vmatpush1.msra.mxu0 0.0
    %1652 = vmatprep.subr.mxu0 0.0
    %1653 = vmatpush1.msra.mxu0 0.0
    %1654 = vmatprep.subr.mxu0 0.0
    %1655 = vmatpush1.msra.mxu0 0.0
    %1656 = vmatprep.subr.mxu0 0.0
    %1657 = vmatpush1.msra.mxu0 0.0
    %1658 = vmatprep.subr.mxu0 0.0
    %1659 = vmatpush1.msra.mxu0 0.0
    %1660 = vmatprep.subr.mxu0 0.0
    %1661 = vmatpush1.msra.mxu0 0.0
    %1662 = vmatprep.subr.mxu0 0.0
    %1663 = vmatpush1.msra.mxu0 0.0
    %1664 = vmatprep.subr.mxu0 0.0
    %1665 = vmatpush1.msra.mxu0 0.0
    %1666 = vmatprep.subr.mxu0 0.0
    %1667 = vmatpush1.msra.mxu0 0.0
    %1668 = vmatprep.subr.mxu0 0.0
    %1669 = vmatpush1.msra.mxu0 0.0
    %1670 = vmatprep.subr.mxu0 0.0
    %1671 = vmatpush1.msra.mxu0 0.0
    %1672 = vmatprep.subr.mxu0 0.0
    %1673 = vmatpush1.msra.mxu0 0.0
    %1674 = vmatprep.subr.mxu0 0.0
    %1675 = vmatpush1.msra.mxu0 0.0
    %1676 = vmatprep.subr.mxu0 0.0
    %1677 = vmatpush1.msra.mxu0 0.0
    %1678 = vmatprep.subr.mxu0 0.0
    %1679 = vmatpush1.msra.mxu0 0.0
    %1680 = vmatprep.subr.mxu0 0.0
    %1681 = vmatpush1.msra.mxu0 0.0
    %1682 = vmatprep.subr.mxu0 0.0
    %1683 = vmatpush1.msra.mxu0 0.0
    %1684 = vmatprep.subr.mxu0 0.0
    %1685 = vmatpush1.msra.mxu0 0.0
    %1686 = vmatprep.subr.mxu0 0.0
    %1687 = vmatpush1.msra.mxu0 0.0
    %1688 = vmatprep.subr.mxu0 0.0
    %1689 = vmatpush1.msra.mxu0 0.0
    %1690 = vmatprep.mubr.f32.mxu0 0.0
    %1691 = vmatmul.mubr.f32.gmra.mrb[0].mxu0 %v1621
    %v1692 = vpop.f32.mrb[0].mxu0
    %v1693 = vadd.f32 0.0, %v1692
    %v1694 = vpop.f32.mrb[0].mxu0
    %1695 = vmatprep.mubr.f32.mxu0 0.0
    %1696 = vmatmul.mubr.f32.gmra.mrb[0].mxu0 %v1624
    %v1697 = vpop.f32.mrb[0].mxu0
    %v1698 = vadd.f32 0.0, %v1697
    %v1699 = vpop.f32.mrb[0].mxu0
    %1700 = vdwg.mxu0
    %v1701 = vld [vmem:[#allocation6] sm:$0xff]
    %v1702 = vld [vmem:[#allocation6 + $0x8] sm:$0xff]
    %v1703 = vld [vmem:[#allocation6 + $0x10] sm:$0xff]
    %v1704 = vld [vmem:[#allocation6 + $0x18] sm:$0xff]
    %v1705 = vld [vmem:[#allocation6 + $0x20] sm:$0xff]
    %v1706 = vld [vmem:[#allocation6 + $0x28] sm:$0xff]
    %v1707 = vld [vmem:[#allocation6 + $0x30] sm:$0xff]
    %v1708 = vld [vmem:[#allocation6 + $0x38] sm:$0xff]
    %v1709 = vld [vmem:[#allocation6 + $0x40] sm:$0xff]
    %v1710 = vld [vmem:[#allocation6 + $0x48] sm:$0xff]
    %v1711 = vld [vmem:[#allocation6 + $0x50] sm:$0xff]
    %v1712 = vld [vmem:[#allocation6 + $0x58] sm:$0xff]
    %v1713 = vld [vmem:[#allocation6 + $0x60] sm:$0xff]
    %v1714 = vld [vmem:[#allocation6 + $0x68] sm:$0xff]
    %v1715 = vld [vmem:[#allocation6 + $0x70] sm:$0xff]
    %v1716 = vld [vmem:[#allocation6 + $0x78] sm:$0xff]
    %v1717 = vld [vmem:[#allocation6 + $0x80] sm:$0xff]
    %v1718 = vld [vmem:[#allocation6 + $0x88] sm:$0xff]
    %v1719 = vld [vmem:[#allocation6 + $0x90] sm:$0xff]
    %v1720 = vld [vmem:[#allocation6 + $0x98] sm:$0xff]
    %v1721 = vld [vmem:[#allocation6 + $0xa0] sm:$0xff]
    %v1722 = vld [vmem:[#allocation6 + $0xa8] sm:$0xff]
    %v1723 = vld [vmem:[#allocation6 + $0xb0] sm:$0xff]
    %v1724 = vld [vmem:[#allocation6 + $0xb8] sm:$0xff]
    %v1725 = vld [vmem:[#allocation6 + $0xc0] sm:$0xff]
    %v1726 = vld [vmem:[#allocation6 + $0xc8] sm:$0xff]
    %v1727 = vld [vmem:[#allocation6 + $0xd0] sm:$0xff]
    %v1728 = vld [vmem:[#allocation6 + $0xd8] sm:$0xff]
    %v1729 = vld [vmem:[#allocation6 + $0xe0] sm:$0xff]
    %v1730 = vld [vmem:[#allocation6 + $0xe8] sm:$0xff]
    %v1731 = vld [vmem:[#allocation6 + $0xf0] sm:$0xff]
    %v1732 = vld [vmem:[#allocation6 + $0xf8] sm:$0xff]
    %v1733 = vld [vmem:[#allocation6 + $0x100] sm:$0xff]
    %v1734 = vld [vmem:[#allocation6 + $0x108] sm:$0xff]
    %v1735 = vld [vmem:[#allocation6 + $0x110] sm:$0xff]
    %v1736 = vld [vmem:[#allocation6 + $0x118] sm:$0xff]
    %v1737 = vld [vmem:[#allocation6 + $0x120] sm:$0xff]
    %v1738 = vld [vmem:[#allocation6 + $0x128] sm:$0xff]
    %v1739 = vld [vmem:[#allocation6 + $0x130] sm:$0xff]
    %v1740 = vld [vmem:[#allocation6 + $0x138] sm:$0xff]
    %v1741 = vld [vmem:[#allocation6 + $0x140] sm:$0xff]
    %v1742 = vld [vmem:[#allocation6 + $0x148] sm:$0xff]
    %v1743 = vld [vmem:[#allocation6 + $0x150] sm:$0xff]
    %v1744 = vld [vmem:[#allocation6 + $0x158] sm:$0xff]
    %v1745 = vld [vmem:[#allocation6 + $0x160] sm:$0xff]
    %v1746 = vld [vmem:[#allocation6 + $0x168] sm:$0xff]
    %v1747 = vld [vmem:[#allocation6 + $0x170] sm:$0xff]
    %v1748 = vld [vmem:[#allocation6 + $0x178] sm:$0xff]
    %v1749 = vld [vmem:[#allocation6 + $0x180] sm:$0xff]
    %v1750 = vld [vmem:[#allocation6 + $0x188] sm:$0xff]
    %v1751 = vld [vmem:[#allocation6 + $0x190] sm:$0xff]
    %v1752 = vld [vmem:[#allocation6 + $0x198] sm:$0xff]
    %v1753 = vld [vmem:[#allocation6 + $0x1a0] sm:$0xff]
    %v1754 = vld [vmem:[#allocation6 + $0x1a8] sm:$0xff]
    %v1755 = vld [vmem:[#allocation6 + $0x1b0] sm:$0xff]
    %v1756 = vld [vmem:[#allocation6 + $0x1b8] sm:$0xff]
    %v1757 = vld [vmem:[#allocation6 + $0x1c0] sm:$0xff]
    %v1758 = vld [vmem:[#allocation6 + $0x1c8] sm:$0xff]
    %v1759 = vld [vmem:[#allocation6 + $0x1d0] sm:$0xff]
    %v1760 = vld [vmem:[#allocation6 + $0x1d8] sm:$0xff]
    %v1761 = vld [vmem:[#allocation6 + $0x1e0] sm:$0xff]
    %v1762 = vld [vmem:[#allocation6 + $0x1e8] sm:$0xff]
    %v1763 = vld [vmem:[#allocation6 + $0x1f0] sm:$0xff]
    %v1764 = vld [vmem:[#allocation6 + $0x1f8] sm:$0xff]
    %v1765 = vld [vmem:[%s5] sm:$0xff]
    %v1766 = vld [vmem:[%s5 + $0x8] sm:$0xff]
    %1767 = vmatprep.subr.mxu0 0.0
    %1768 = vmatpush1.msra.mxu0 %v1701
    %1769 = vmatprep.subr.mxu0 0.0
    %1770 = vmatpush1.msra.mxu0 %v1702
    %1771 = vmatprep.subr.mxu0 0.0
    %1772 = vmatpush1.msra.mxu0 %v1703
    %1773 = vmatprep.subr.mxu0 0.0
    %1774 = vmatpush1.msra.mxu0 %v1704
    %1775 = vmatprep.subr.mxu0 0.0
    %1776 = vmatpush1.msra.mxu0 %v1705
    %1777 = vmatprep.subr.mxu0 0.0
    %1778 = vmatpush1.msra.mxu0 %v1706
    %1779 = vmatprep.subr.mxu0 0.0
    %1780 = vmatpush1.msra.mxu0 %v1707
    %1781 = vmatprep.subr.mxu0 0.0
    %1782 = vmatpush1.msra.mxu0 %v1708
    %1783 = vmatprep.subr.mxu0 0.0
    %1784 = vmatpush1.msra.mxu0 %v1709
    %1785 = vmatprep.subr.mxu0 0.0
    %1786 = vmatpush1.msra.mxu0 %v1710
    %1787 = vmatprep.subr.mxu0 0.0
    %1788 = vmatpush1.msra.mxu0 %v1711
    %1789 = vmatprep.subr.mxu0 0.0
    %1790 = vmatpush1.msra.mxu0 %v1712
    %1791 = vmatprep.subr.mxu0 0.0
    %1792 = vmatpush1.msra.mxu0 %v1713
    %1793 = vmatprep.subr.mxu0 0.0
    %1794 = vmatpush1.msra.mxu0 %v1714
    %1795 = vmatprep.subr.mxu0 0.0
    %1796 = vmatpush1.msra.mxu0 %v1715
    %1797 = vmatprep.subr.mxu0 0.0
    %1798 = vmatpush1.msra.mxu0 %v1716
    %1799 = vmatprep.subr.mxu0 0.0
    %1800 = vmatpush1.msra.mxu0 %v1717
    %1801 = vmatprep.subr.mxu0 0.0
    %1802 = vmatpush1.msra.mxu0 %v1718
    %1803 = vmatprep.subr.mxu0 0.0
    %1804 = vmatpush1.msra.mxu0 %v1719
    %1805 = vmatprep.subr.mxu0 0.0
    %1806 = vmatpush1.msra.mxu0 %v1720
    %1807 = vmatprep.subr.mxu0 0.0
    %1808 = vmatpush1.msra.mxu0 %v1721
    %1809 = vmatprep.subr.mxu0 0.0
    %1810 = vmatpush1.msra.mxu0 %v1722
    %1811 = vmatprep.subr.mxu0 0.0
    %1812 = vmatpush1.msra.mxu0 %v1723
    %1813 = vmatprep.subr.mxu0 0.0
    %1814 = vmatpush1.msra.mxu0 %v1724
    %1815 = vmatprep.subr.mxu0 0.0
    %1816 = vmatpush1.msra.mxu0 %v1725
    %1817 = vmatprep.subr.mxu0 0.0
    %1818 = vmatpush1.msra.mxu0 %v1726
    %1819 = vmatprep.subr.mxu0 0.0
    %1820 = vmatpush1.msra.mxu0 %v1727
    %1821 = vmatprep.subr.mxu0 0.0
    %1822 = vmatpush1.msra.mxu0 %v1728
    %1823 = vmatprep.subr.mxu0 0.0
    %1824 = vmatpush1.msra.mxu0 %v1729
    %1825 = vmatprep.subr.mxu0 0.0
    %1826 = vmatpush1.msra.mxu0 %v1730
    %1827 = vmatprep.subr.mxu0 0.0
    %1828 = vmatpush1.msra.mxu0 %v1731
    %1829 = vmatprep.subr.mxu0 0.0
    %1830 = vmatpush1.msra.mxu0 %v1732
    %1831 = vmatprep.mubr.f32.mxu0 %v1531
    %1832 = vmatmul.mubr.f32.gmra.mrb[0].mxu0 %v1450
    %v1833 = vpop.f32.mrb[0].mxu0
    %v1834 = vadd.f32 %v1765, %v1833
    %v1835 = vpop.f32.mrb[0].mxu0
    %1836 = vmatprep.mubr.f32.mxu0 %v1536
    %1837 = vmatmul.mubr.f32.gmra.mrb[0].mxu0 %v1455
    %v1838 = vpop.f32.mrb[0].mxu0
    %v1839 = vadd.f32 %v1766, %v1838
    %v1840 = vpop.f32.mrb[0].mxu0
    %1841 = vdwg.mxu0
    %1842 = vmatprep.subr.mxu0 0.0
    %1843 = vmatpush1.msra.mxu0 %v1733
    %1844 = vmatprep.subr.mxu0 0.0
    %1845 = vmatpush1.msra.mxu0 %v1734
    %1846 = vmatprep.subr.mxu0 0.0
    %1847 = vmatpush1.msra.mxu0 %v1735
    %1848 = vmatprep.subr.mxu0 0.0
    %1849 = vmatpush1.msra.mxu0 %v1736
    %1850 = vmatprep.subr.mxu0 0.0
    %1851 = vmatpush1.msra.mxu0 %v1737
    %1852 = vmatprep.subr.mxu0 0.0
    %1853 = vmatpush1.msra.mxu0 %v1738
    %1854 = vmatprep.subr.mxu0 0.0
    %1855 = vmatpush1.msra.mxu0 %v1739
    %1856 = vmatprep.subr.mxu0 0.0
    %1857 = vmatpush1.msra.mxu0 %v1740
    %1858 = vmatprep.subr.mxu0 0.0
    %1859 = vmatpush1.msra.mxu0 %v1741
    %1860 = vmatprep.subr.mxu0 0.0
    %1861 = vmatpush1.msra.mxu0 %v1742
    %1862 = vmatprep.subr.mxu0 0.0
    %1863 = vmatpush1.msra.mxu0 %v1743
    %1864 = vmatprep.subr.mxu0 0.0
    %1865 = vmatpush1.msra.mxu0 %v1744
    %1866 = vmatprep.subr.mxu0 0.0
    %1867 = vmatpush1.msra.mxu0 %v1745
    %1868 = vmatprep.subr.mxu0 0.0
    %1869 = vmatpush1.msra.mxu0 %v1746
    %1870 = vmatprep.subr.mxu0 0.0
    %1871 = vmatpush1.msra.mxu0 %v1747
    %1872 = vmatprep.subr.mxu0 0.0
    %1873 = vmatpush1.msra.mxu0 %v1748
    %1874 = vmatprep.subr.mxu0 0.0
    %1875 = vmatpush1.msra.mxu0 %v1749
    %1876 = vmatprep.subr.mxu0 0.0
    %1877 = vmatpush1.msra.mxu0 %v1750
    %1878 = vmatprep.subr.mxu0 0.0
    %1879 = vmatpush1.msra.mxu0 %v1751
    %1880 = vmatprep.subr.mxu0 0.0
    %1881 = vmatpush1.msra.mxu0 %v1752
    %1882 = vmatprep.subr.mxu0 0.0
    %1883 = vmatpush1.msra.mxu0 %v1753
    %1884 = vmatprep.subr.mxu0 0.0
    %1885 = vmatpush1.msra.mxu0 %v1754
    %1886 = vmatprep.subr.mxu0 0.0
    %1887 = vmatpush1.msra.mxu0 %v1755
    %1888 = vmatprep.subr.mxu0 0.0
    %1889 = vmatpush1.msra.mxu0 %v1756
    %1890 = vmatprep.subr.mxu0 0.0
    %1891 = vmatpush1.msra.mxu0 %v1757
    %1892 = vmatprep.subr.mxu0 0.0
    %1893 = vmatpush1.msra.mxu0 %v1758
    %1894 = vmatprep.subr.mxu0 0.0
    %1895 = vmatpush1.msra.mxu0 %v1759
    %1896 = vmatprep.subr.mxu0 0.0
    %1897 = vmatpush1.msra.mxu0 %v1760
    %1898 = vmatprep.subr.mxu0 0.0
    %1899 = vmatpush1.msra.mxu0 %v1761
    %1900 = vmatprep.subr.mxu0 0.0
    %1901 = vmatpush1.msra.mxu0 %v1762
    %1902 = vmatprep.subr.mxu0 0.0
    %1903 = vmatpush1.msra.mxu0 %v1763
    %1904 = vmatprep.subr.mxu0 0.0
    %1905 = vmatpush1.msra.mxu0 %v1764
    %1906 = vmatprep.mubr.f32.mxu0 %v1693
    %1907 = vmatmul.mubr.f32.gmra.mrb[0].mxu0 %v1612
    %v1908 = vpop.f32.mrb[0].mxu0
    %v1909 = vadd.f32 %v1834, %v1908
    %v1910 = vpop.f32.mrb[0].mxu0
    %1911 = vmatprep.mubr.f32.mxu0 %v1698
    %1912 = vmatmul.mubr.f32.gmra.mrb[0].mxu0 %v1617
    %v1913 = vpop.f32.mrb[0].mxu0
    %v1914 = vadd.f32 %v1839, %v1913
    %v1915 = vpop.f32.mrb[0].mxu0
    %1916 = vdwg.mxu0
    %1917 = vst [vmem:[%s7] sm:$0xff] %v1909
    %1918 = vst [vmem:[%s7 + $0x8] sm:$0xff] %v1914
    %v1919 = vsel %vm1288, %v1369, 0.0
    %v1920 = vsel %vm1288, %v1370, 0.0
    %v1921 = vsel %vm1288, %v1371, 0.0
    %v1922 = vsel %vm1288, %v1372, 0.0
    %v1923 = vsel %vm1288, %v1373, 0.0
    %v1924 = vsel %vm1288, %v1374, 0.0
    %v1925 = vsel %vm1288, %v1375, 0.0
    %v1926 = vsel %vm1288, %v1376, 0.0
    %1927 = vst [vmem:[%s8] sm:$0xff] %v1919
    %1928 = vst [vmem:[%s8 + $0x8] sm:$0xff] %v1920
    %1929 = vst [vmem:[%s8 + $0x10] sm:$0xff] %v1921
    %1930 = vst [vmem:[%s8 + $0x18] sm:$0xff] %v1922
    %1931 = vst [vmem:[%s8 + $0x20] sm:$0xff] %v1923
    %1932 = vst [vmem:[%s8 + $0x28] sm:$0xff] %v1924
    %1933 = vst [vmem:[%s8 + $0x30] sm:$0xff] %v1925
    %1934 = vst [vmem:[%s8 + $0x38] sm:$0xff] %v1926
    // Predicated region
    $region42: #{multi_head_attention.1} parent=1 // pred_check
      _
    $region43: #{multi_head_attention.1} parent=1 // pred_check_branch
      %1936 = sbr.rel (0) target = $region45
    $region44: #{multi_head_attention.1} parent=1 // pred_region
      _
    $region45: #{multi_head_attention.1} parent=1 // pred_fallthru
      _
    // Predicated region
    $region46: #{multi_head_attention.1} parent=1 // pred_check
      _
    $region47: #{multi_head_attention.1} parent=1 // pred_check_branch
      %1938 = sbr.rel (0) target = $region49
    $region48: #{multi_head_attention.1} parent=1 // pred_region
      _
    $region49: #{multi_head_attention.1} parent=1 // pred_fallthru
      _
    // Predicated region
    $region50: #{multi_head_attention.1} parent=1 // pred_check
      _
    $region51: #{multi_head_attention.1} parent=1 // pred_check_branch
      %1940 = sbr.rel (0) target = $region53
    $region52: #{multi_head_attention.1} parent=1 // pred_region
      _
    $region53: #{multi_head_attention.1} parent=1 // pred_fallthru
      _
    // Predicated region
    $region54: #{multi_head_attention.1} parent=1 // pred_check
      _
    $region55: #{multi_head_attention.1} parent=1 // pred_check_branch
      %1942 = sbr.rel (0) target = $region57
    $region56: #{multi_head_attention.1} parent=1 // pred_region
      _
    $region57: #{multi_head_attention.1} parent=1 // pred_fallthru
      _
    %1943 = vsyncpa [#allocation3], 1
    %1944 = vsyncpa [#allocation5], 1

</llo_original>
